<compile_context>
chip_gen: v6e
topology: v6e:2x2x1
jax: 0.10.0
libtpu: 0.0.40
codegen_flags: <defaults>
</compile_context>

<pallas_src>
import functools

import jax
import jax.numpy as jnp
from jax import lax
from jax.experimental import pallas as pl
from jax.experimental.pallas import tpu as pltpu


def idihr_kernel(
    pr_ref, m_ref,
    wq1_ref, wk1_ref, wv1_ref,
    wq3_ref, wk3_ref, wv3_ref,
    wfc_h_ref, wfc_m_ref,
    b1_ref, b3_ref, bfc_ref,
    out_ref,
    *, tb, b_real,
):
    """One grid step: rows [i*tb, (i+1)*tb) of the batch against all keys."""
    row0 = pl.multiple_of(pl.program_id(0) * tb, tb)

    def attend(x_ref, wq_ref, wk_ref, wv_ref, b_ref):
        # Query tile (tb, F); keys/values use the full padded batch (Bp, F).
        xq = x_ref[pl.ds(row0, tb), :]
        xkv = x_ref[...]
        # bf16 MXU matmuls, f32 accumulation; scale already folded into Wq/bq.
        q = (jnp.dot(xq, wq_ref[...], preferred_element_type=jnp.float32)
             + b_ref[0:1, :]).astype(jnp.bfloat16)
        k = (jnp.dot(xkv, wk_ref[...], preferred_element_type=jnp.float32)
             + b_ref[1:2, :]).astype(jnp.bfloat16)
        v = (jnp.dot(xkv, wv_ref[...], preferred_element_type=jnp.float32)
             + b_ref[2:3, :]).astype(jnp.bfloat16)
        # q @ k^T without materializing a transposed copy of k.
        s = lax.dot_general(q, k, (((1,), (1,)), ((), ())),
                            preferred_element_type=jnp.float32)   # (tb, Bp)
        # Mask padded batch rows out of the key axis.
        key_ids = lax.broadcasted_iota(jnp.int32, s.shape, 1)
        s = jnp.where(key_ids < b_real, s, -1e30)
        # Numerically-stable softmax; divide via EUP approx reciprocal.
        s = s - jnp.max(s, axis=-1, keepdims=True)
        p = jnp.exp(s)
        inv = pl.reciprocal(jnp.sum(p, axis=-1, keepdims=True), approx=True)
        p = (p * inv).astype(jnp.bfloat16)
        return jnp.dot(p, v, preferred_element_type=jnp.float32)  # (tb, F)

    # a1 = SelfAttention(hidden)(pool_r) ; a3 = SelfAttention(max_len)(m)
    x1 = attend(pr_ref, wq1_ref, wk1_ref, wv1_ref, b1_ref)
    x3 = attend(m_ref, wq3_ref, wk3_ref, wv3_ref, b3_ref)

    # fc(cat([x1, x3], dim=1)) as a split matmul (avoids an in-kernel concat).
    logits = (
        jnp.dot(x1.astype(jnp.bfloat16), wfc_h_ref[...],
                preferred_element_type=jnp.float32)
        + jnp.dot(x3.astype(jnp.bfloat16), wfc_m_ref[...],
                  preferred_element_type=jnp.float32)
        + bfc_ref[...]
    )
    out_ref[...] = logits.astype(out_ref.dtype)


def _round_up(n, m):
    return ((n + m - 1) // m) * m


def _pad2d(x, rows, cols):
    r, c = x.shape
    return jnp.pad(x, ((0, rows - r), (0, cols - c)))


def idihr_hr_forward(pool_r, m, params, *, tb=None):
    B, hidden = pool_r.shape
    _, max_len = m.shape
    num_labels = params["b_fc"].shape[-1]

    LANE = 128
    SUB = 16  # bf16 sublane packing granularity

    Bp = _round_up(B, SUB)
    Hp = _round_up(hidden, LANE)
    Lp = _round_up(max_len, LANE)
    NLp = _round_up(num_labels, LANE)

    # Query-row tile size: multiple of 16 that divides the padded batch.
    if tb is None:
        tb = min(Bp, 128)
    tb = max(SUB, _round_up(tb, SUB))
    while Bp % tb:
        tb -= SUB
    num_tiles = Bp // tb

    f32, bf16 = jnp.float32, jnp.bfloat16

    # Fold the 1/sqrt(d) softmax scale into the query projection.
    sc1 = 1.0 / (hidden ** 0.5)
    sc3 = 1.0 / (max_len ** 0.5)

    # Zero-pad to lane/sublane-aligned shapes; cast matmul operands to bf16
    # once here (biases stay f32 and are added to the f32 accumulator).
    pr = _pad2d(pool_r.astype(f32), Bp, Hp).astype(bf16)
    mm = _pad2d(m.astype(f32), Bp, Lp).astype(bf16)

    wq1 = _pad2d(params["wq1"] * sc1, Hp, Hp).astype(bf16)
    wk1 = _pad2d(params["wk1"], Hp, Hp).astype(bf16)
    wv1 = _pad2d(params["wv1"], Hp, Hp).astype(bf16)
    wq3 = _pad2d(params["wq3"] * sc3, Lp, Lp).astype(bf16)
    wk3 = _pad2d(params["wk3"], Lp, Lp).astype(bf16)
    wv3 = _pad2d(params["wv3"], Lp, Lp).astype(bf16)
    wfc_h = _pad2d(params["wfc_h"], Hp, NLp).astype(bf16)
    wfc_m = _pad2d(params["wfc_m"], Lp, NLp).astype(bf16)

    # Pack biases: rows [q, k, v].
    b1 = jnp.concatenate(
        [_pad2d(params["bq1"] * sc1, 1, Hp),
         _pad2d(params["bk1"], 1, Hp),
         _pad2d(params["bv1"], 1, Hp)], axis=0).astype(f32)     # (3, Hp)
    b3 = jnp.concatenate(
        [_pad2d(params["bq3"] * sc3, 1, Lp),
         _pad2d(params["bk3"], 1, Lp),
         _pad2d(params["bv3"], 1, Lp)], axis=0).astype(f32)     # (3, Lp)
    bfc = _pad2d(params["b_fc"], 1, NLp).astype(f32)            # (1, NLp)

    args = (pr, mm, wq1, wk1, wv1, wq3, wk3, wv3, wfc_h, wfc_m, b1, b3, bfc)

    def full(shape):
        return pl.BlockSpec(shape, lambda i, _n=len(shape): (0,) * _n)

    in_specs = [
        full((Bp, Hp)), full((Bp, Lp)),
        full((Hp, Hp)), full((Hp, Hp)), full((Hp, Hp)),
        full((Lp, Lp)), full((Lp, Lp)), full((Lp, Lp)),
        full((Hp, NLp)), full((Lp, NLp)),
        full((3, Hp)), full((3, Lp)), full((1, NLp)),
    ]
    out_specs = pl.BlockSpec((tb, NLp), lambda i: (i, 0))

    # Explicit VMEM budget: double-buffered inputs + output + intermediates,
    # clamped to [16 MiB, 64 MiB] (v7x physical VMEM is 64 MiB per TC).
    est = 2 * sum(int(a.size) * a.dtype.itemsize for a in args)
    est += 2 * tb * NLp * 4                       # output tiles
    est += 16 * Bp * max(Hp, Lp, Bp) * 4          # q/k/v/scores headroom
    vmem_limit = int(min(64 << 20, max(16 << 20, 2 * est)))

    kernel = functools.partial(idihr_kernel, tb=tb, b_real=B)

    out_padded = pl.pallas_call(
        kernel,
        out_shape=jax.ShapeDtypeStruct((Bp, NLp), jnp.float32),
        grid=(num_tiles,),
        in_specs=in_specs,
        out_specs=out_specs,
        compiler_params=pltpu.CompilerParams(
            dimension_semantics=("parallel",),
            vmem_limit_bytes=vmem_limit,
        ),
    )(*args)

    return out_padded[:B, :num_labels]


def make_params(key, hidden, max_len, num_labels):
    """Deterministic parameter init. Linear weights stored pre-transposed as
    (in_features, out_features) so the kernel does x @ W; biases stored (1, F)."""
    ks = jax.random.split(key, 16)

    def lin(kw, kb, fin, fout):
        w = jax.random.normal(kw, (fin, fout), jnp.float32) * (1.0 / (fin ** 0.5))
        b = jax.random.normal(kb, (1, fout), jnp.float32) * 0.01
        return w, b

    p = {}
    p["wq1"], p["bq1"] = lin(ks[0], ks[1], hidden, hidden)
    p["wk1"], p["bk1"] = lin(ks[2], ks[3], hidden, hidden)
    p["wv1"], p["bv1"] = lin(ks[4], ks[5], hidden, hidden)
    p["wq3"], p["bq3"] = lin(ks[6], ks[7], max_len, max_len)
    p["wk3"], p["bk3"] = lin(ks[8], ks[9], max_len, max_len)
    p["wv3"], p["bv3"] = lin(ks[10], ks[11], max_len, max_len)
    # fc: Linear(hidden + max_len, num_labels), split row-wise for the kernel.
    wfc, bfc = lin(ks[12], ks[13], hidden + max_len, num_labels)
    p["wfc_h"] = wfc[:hidden, :]
    p["wfc_m"] = wfc[hidden:, :]
    p["b_fc"] = bfc
    return p


def reference_forward(pool_r, m, params):
    """Pure-JAX f32 reference mirroring the PyTorch forward (eval mode)."""
    def attn(x, wq, bq, wk, bk, wv, bv, d):
        q = x @ wq + bq
        k = x @ wk + bk
        v = x @ wv + bv
        s = (q @ k.T) / (d ** 0.5)
        p = jax.nn.softmax(s, axis=-1)
        return p @ v

    hidden = pool_r.shape[1]
    max_len = m.shape[1]
    x1 = attn(pool_r, params["wq1"], params["bq1"], params["wk1"], params["bk1"],
              params["wv1"], params["bv1"], hidden)
    x3 = attn(m, params["wq3"], params["bq3"], params["wk3"], params["bk3"],
              params["wv3"], params["bv3"], max_len)
    x = jnp.concatenate([x1, x3], axis=1)
    wfc = jnp.concatenate([params["wfc_h"], params["wfc_m"]], axis=0)
    return x @ wfc + params["b_fc"]


if __name__ == "__main__":
    B = 2
    HIDDEN = 32      # stands in for roberta.config.hidden_size
    MAX_LEN = 8
    NUM_LABELS = 4

    key = jax.random.PRNGKey(0)
    k_pool, k_mask, k_params = jax.random.split(key, 3)

    pool_r = jax.random.normal(k_pool, (B, HIDDEN), jnp.float32)
    m = jax.random.normal(k_mask, (B, MAX_LEN), jnp.float32)
    params = make_params(k_params, HIDDEN, MAX_LEN, NUM_LABELS)

    out = idihr_hr_forward(pool_r, m, params)
    out = jax.block_until_ready(out)

    ref = reference_forward(pool_r, m, params)
    assert out.shape == (B, NUM_LABELS), out.shape
    # bf16 MXU operands + approx reciprocal => looser tolerance vs f32 reference.
    assert jnp.allclose(out, ref, atol=5e-2, rtol=5e-2), (out, ref)

    print("KERNEL_OK")
</pallas_src>

<mosaic_0001>
module attributes {stable_mosaic.version = 11 : i64} {
  func.func @idihr_kernel(%arg0: i32, %arg1: memref<16x128xbf16, #tpu.memory_space<vmem>>, %arg2: memref<16x128xbf16, #tpu.memory_space<vmem>>, %arg3: memref<128x128xbf16, #tpu.memory_space<vmem>>, %arg4: memref<128x128xbf16, #tpu.memory_space<vmem>>, %arg5: memref<128x128xbf16, #tpu.memory_space<vmem>>, %arg6: memref<128x128xbf16, #tpu.memory_space<vmem>>, %arg7: memref<128x128xbf16, #tpu.memory_space<vmem>>, %arg8: memref<128x128xbf16, #tpu.memory_space<vmem>>, %arg9: memref<128x128xbf16, #tpu.memory_space<vmem>>, %arg10: memref<128x128xbf16, #tpu.memory_space<vmem>>, %arg11: memref<3x128xf32, #tpu.memory_space<vmem>>, %arg12: memref<3x128xf32, #tpu.memory_space<vmem>>, %arg13: memref<1x128xf32, #tpu.memory_space<vmem>>, %arg14: memref<16x128xf32, #tpu.memory_space<vmem>>) attributes {dimension_semantics = [#tpu.dimension_semantics<parallel>], iteration_bounds = array<i64: 1>, scalar_prefetch = 0 : i64, scratch_operands = 0 : i64, tpu.core_type = #tpu.core_type<tc>, window_params = [{pipeline_mode = #tpu.pipeline_mode<synchronous>, transform_indices = @transform_0, window_bounds = array<i64: 16, 128>}, {pipeline_mode = #tpu.pipeline_mode<synchronous>, transform_indices = @transform_1, window_bounds = array<i64: 16, 128>}, {pipeline_mode = #tpu.pipeline_mode<synchronous>, transform_indices = @transform_2, window_bounds = array<i64: 128, 128>}, {pipeline_mode = #tpu.pipeline_mode<synchronous>, transform_indices = @transform_3, window_bounds = array<i64: 128, 128>}, {pipeline_mode = #tpu.pipeline_mode<synchronous>, transform_indices = @transform_4, window_bounds = array<i64: 128, 128>}, {pipeline_mode = #tpu.pipeline_mode<synchronous>, transform_indices = @transform_5, window_bounds = array<i64: 128, 128>}, {pipeline_mode = #tpu.pipeline_mode<synchronous>, transform_indices = @transform_6, window_bounds = array<i64: 128, 128>}, {pipeline_mode = #tpu.pipeline_mode<synchronous>, transform_indices = @transform_7, window_bounds = array<i64: 128, 128>}, {pipeline_mode = #tpu.pipeline_mode<synchronous>, transform_indices = @transform_8, window_bounds = array<i64: 128, 128>}, {pipeline_mode = #tpu.pipeline_mode<synchronous>, transform_indices = @transform_9, window_bounds = array<i64: 128, 128>}, {pipeline_mode = #tpu.pipeline_mode<synchronous>, transform_indices = @transform_10, window_bounds = array<i64: 3, 128>}, {pipeline_mode = #tpu.pipeline_mode<synchronous>, transform_indices = @transform_11, window_bounds = array<i64: 3, 128>}, {pipeline_mode = #tpu.pipeline_mode<synchronous>, transform_indices = @transform_12, window_bounds = array<i64: 1, 128>}, {transform_indices = @transform_13, window_bounds = array<i64: 16, 128>}]} {
    %c16_i32 = arith.constant 16 : i32
    %0 = arith.muli %arg0, %c16_i32 : i32
    %1 = tpu.assume_multiple %0, 16 : i32
    %2 = arith.index_cast %1 : i32 to index
    %c0 = arith.constant 0 : index
    %3 = vector.load %arg1[%2, %c0] : memref<16x128xbf16, #tpu.memory_space<vmem>>, vector<16x128xbf16>
    %c0_0 = arith.constant 0 : index
    %c0_1 = arith.constant 0 : index
    %4 = vector.load %arg1[%c0_0, %c0_1] : memref<16x128xbf16, #tpu.memory_space<vmem>>, vector<16x128xbf16>
    %c0_2 = arith.constant 0 : index
    %c0_3 = arith.constant 0 : index
    %5 = vector.load %arg3[%c0_2, %c0_3] : memref<128x128xbf16, #tpu.memory_space<vmem>>, vector<128x128xbf16>
    %cst = arith.constant dense<0.000000e+00> : vector<16x128xf32>
    %6 = tpu.matmul %3, %5, %cst {dimension_numbers = #tpu.dot_dimension_numbers<[1], [0], [0], [1], [0, 0, 1, 1], [], []>} : vector<16x128xbf16>, vector<128x128xbf16>, vector<16x128xf32> -> vector<16x128xf32>
    %c0_4 = arith.constant 0 : index
    %c0_5 = arith.constant 0 : index
    %7 = vector.load %arg11[%c0_4, %c0_5] : memref<3x128xf32, #tpu.memory_space<vmem>>, vector<1x128xf32>
    %8 = vector.broadcast %7 : vector<1x128xf32> to vector<16x128xf32>
    %9 = arith.addf %6, %8 : vector<16x128xf32>
    %10 = arith.truncf %9 : vector<16x128xf32> to vector<16x128xbf16>
    %c0_6 = arith.constant 0 : index
    %c0_7 = arith.constant 0 : index
    %11 = vector.load %arg4[%c0_6, %c0_7] : memref<128x128xbf16, #tpu.memory_space<vmem>>, vector<128x128xbf16>
    %cst_8 = arith.constant dense<0.000000e+00> : vector<16x128xf32>
    %12 = tpu.matmul %4, %11, %cst_8 {dimension_numbers = #tpu.dot_dimension_numbers<[1], [0], [0], [1], [0, 0, 1, 1], [], []>} : vector<16x128xbf16>, vector<128x128xbf16>, vector<16x128xf32> -> vector<16x128xf32>
    %c1 = arith.constant 1 : index
    %c0_9 = arith.constant 0 : index
    %13 = vector.load %arg11[%c1, %c0_9] : memref<3x128xf32, #tpu.memory_space<vmem>>, vector<1x128xf32>
    %14 = vector.broadcast %13 : vector<1x128xf32> to vector<16x128xf32>
    %15 = arith.addf %12, %14 : vector<16x128xf32>
    %16 = arith.truncf %15 : vector<16x128xf32> to vector<16x128xbf16>
    %c0_10 = arith.constant 0 : index
    %c0_11 = arith.constant 0 : index
    %17 = vector.load %arg5[%c0_10, %c0_11] : memref<128x128xbf16, #tpu.memory_space<vmem>>, vector<128x128xbf16>
    %cst_12 = arith.constant dense<0.000000e+00> : vector<16x128xf32>
    %18 = tpu.matmul %4, %17, %cst_12 {dimension_numbers = #tpu.dot_dimension_numbers<[1], [0], [0], [1], [0, 0, 1, 1], [], []>} : vector<16x128xbf16>, vector<128x128xbf16>, vector<16x128xf32> -> vector<16x128xf32>
    %c2 = arith.constant 2 : index
    %c0_13 = arith.constant 0 : index
    %19 = vector.load %arg11[%c2, %c0_13] : memref<3x128xf32, #tpu.memory_space<vmem>>, vector<1x128xf32>
    %20 = vector.broadcast %19 : vector<1x128xf32> to vector<16x128xf32>
    %21 = arith.addf %18, %20 : vector<16x128xf32>
    %22 = arith.truncf %21 : vector<16x128xf32> to vector<16x128xbf16>
    %cst_14 = arith.constant dense<0.000000e+00> : vector<16x16xf32>
    %23 = tpu.matmul %10, %16, %cst_14 {dimension_numbers = #tpu.dot_dimension_numbers<[1], [1], [0], [0], [0, 0, 1, 0], [], []>} : vector<16x128xbf16>, vector<16x128xbf16>, vector<16x16xf32> -> vector<16x16xf32>
    %24 = tpu.iota {dimensions = array<i32: 1>} : vector<16x16xi32>
    %c2_i32 = arith.constant 2 : i32
    %25 = vector.broadcast %c2_i32 : i32 to vector<16x16xi32>
    %26 = arith.cmpi slt, %24, %25 : vector<16x16xi32>
    %cst_15 = arith.constant -1.000000e+30 : f32
    %27 = vector.broadcast %cst_15 : f32 to vector<16x16xf32>
    %28 = arith.select %26, %23, %27 : vector<16x16xi1>, vector<16x16xf32>
    %cst_16 = arith.constant dense<0xFF800000> : vector<16xf32>
    %29 = vector.multi_reduction <maximumf>, %28, %cst_16 [1] : vector<16x16xf32> to vector<16xf32>
    %30 = vector.shape_cast %29 : vector<16xf32> to vector<16x1xf32>
    %31 = vector.broadcast %30 : vector<16x1xf32> to vector<16x16xf32>
    %32 = arith.subf %28, %31 : vector<16x16xf32>
    %33 = math.exp %32 : vector<16x16xf32>
    %cst_17 = arith.constant dense<0.000000e+00> : vector<16xf32>
    %34 = vector.multi_reduction <add>, %33, %cst_17 [1] : vector<16x16xf32> to vector<16xf32>
    %35 = vector.shape_cast %34 : vector<16xf32> to vector<16x1xf32>
    %36 = tpu.reciprocal %35 {approx = true} : vector<16x1xf32> -> vector<16x1xf32>
    %37 = vector.broadcast %36 : vector<16x1xf32> to vector<16x16xf32>
    %38 = arith.mulf %33, %37 : vector<16x16xf32>
    %39 = arith.truncf %38 : vector<16x16xf32> to vector<16x16xbf16>
    %cst_18 = arith.constant dense<0.000000e+00> : vector<16x128xf32>
    %40 = tpu.matmul %39, %22, %cst_18 {dimension_numbers = #tpu.dot_dimension_numbers<[1], [0], [0], [1], [0, 0, 1, 1], [], []>} : vector<16x16xbf16>, vector<16x128xbf16>, vector<16x128xf32> -> vector<16x128xf32>
    %41 = arith.index_cast %1 : i32 to index
    %c0_19 = arith.constant 0 : index
    %42 = vector.load %arg2[%41, %c0_19] : memref<16x128xbf16, #tpu.memory_space<vmem>>, vector<16x128xbf16>
    %c0_20 = arith.constant 0 : index
    %c0_21 = arith.constant 0 : index
    %43 = vector.load %arg2[%c0_20, %c0_21] : memref<16x128xbf16, #tpu.memory_space<vmem>>, vector<16x128xbf16>
    %c0_22 = arith.constant 0 : index
    %c0_23 = arith.constant 0 : index
    %44 = vector.load %arg6[%c0_22, %c0_23] : memref<128x128xbf16, #tpu.memory_space<vmem>>, vector<128x128xbf16>
    %cst_24 = arith.constant dense<0.000000e+00> : vector<16x128xf32>
    %45 = tpu.matmul %42, %44, %cst_24 {dimension_numbers = #tpu.dot_dimension_numbers<[1], [0], [0], [1], [0, 0, 1, 1], [], []>} : vector<16x128xbf16>, vector<128x128xbf16>, vector<16x128xf32> -> vector<16x128xf32>
    %c0_25 = arith.constant 0 : index
    %c0_26 = arith.constant 0 : index
    %46 = vector.load %arg12[%c0_25, %c0_26] : memref<3x128xf32, #tpu.memory_space<vmem>>, vector<1x128xf32>
    %47 = vector.broadcast %46 : vector<1x128xf32> to vector<16x128xf32>
    %48 = arith.addf %45, %47 : vector<16x128xf32>
    %49 = arith.truncf %48 : vector<16x128xf32> to vector<16x128xbf16>
    %c0_27 = arith.constant 0 : index
    %c0_28 = arith.constant 0 : index
    %50 = vector.load %arg7[%c0_27, %c0_28] : memref<128x128xbf16, #tpu.memory_space<vmem>>, vector<128x128xbf16>
    %cst_29 = arith.constant dense<0.000000e+00> : vector<16x128xf32>
    %51 = tpu.matmul %43, %50, %cst_29 {dimension_numbers = #tpu.dot_dimension_numbers<[1], [0], [0], [1], [0, 0, 1, 1], [], []>} : vector<16x128xbf16>, vector<128x128xbf16>, vector<16x128xf32> -> vector<16x128xf32>
    %c1_30 = arith.constant 1 : index
    %c0_31 = arith.constant 0 : index
    %52 = vector.load %arg12[%c1_30, %c0_31] : memref<3x128xf32, #tpu.memory_space<vmem>>, vector<1x128xf32>
    %53 = vector.broadcast %52 : vector<1x128xf32> to vector<16x128xf32>
    %54 = arith.addf %51, %53 : vector<16x128xf32>
    %55 = arith.truncf %54 : vector<16x128xf32> to vector<16x128xbf16>
    %c0_32 = arith.constant 0 : index
    %c0_33 = arith.constant 0 : index
    %56 = vector.load %arg8[%c0_32, %c0_33] : memref<128x128xbf16, #tpu.memory_space<vmem>>, vector<128x128xbf16>
    %cst_34 = arith.constant dense<0.000000e+00> : vector<16x128xf32>
    %57 = tpu.matmul %43, %56, %cst_34 {dimension_numbers = #tpu.dot_dimension_numbers<[1], [0], [0], [1], [0, 0, 1, 1], [], []>} : vector<16x128xbf16>, vector<128x128xbf16>, vector<16x128xf32> -> vector<16x128xf32>
    %c2_35 = arith.constant 2 : index
    %c0_36 = arith.constant 0 : index
    %58 = vector.load %arg12[%c2_35, %c0_36] : memref<3x128xf32, #tpu.memory_space<vmem>>, vector<1x128xf32>
    %59 = vector.broadcast %58 : vector<1x128xf32> to vector<16x128xf32>
    %60 = arith.addf %57, %59 : vector<16x128xf32>
    %61 = arith.truncf %60 : vector<16x128xf32> to vector<16x128xbf16>
    %cst_37 = arith.constant dense<0.000000e+00> : vector<16x16xf32>
    %62 = tpu.matmul %49, %55, %cst_37 {dimension_numbers = #tpu.dot_dimension_numbers<[1], [1], [0], [0], [0, 0, 1, 0], [], []>} : vector<16x128xbf16>, vector<16x128xbf16>, vector<16x16xf32> -> vector<16x16xf32>
    %63 = tpu.iota {dimensions = array<i32: 1>} : vector<16x16xi32>
    %c2_i32_38 = arith.constant 2 : i32
    %64 = vector.broadcast %c2_i32_38 : i32 to vector<16x16xi32>
    %65 = arith.cmpi slt, %63, %64 : vector<16x16xi32>
    %cst_39 = arith.constant -1.000000e+30 : f32
    %66 = vector.broadcast %cst_39 : f32 to vector<16x16xf32>
    %67 = arith.select %65, %62, %66 : vector<16x16xi1>, vector<16x16xf32>
    %cst_40 = arith.constant dense<0xFF800000> : vector<16xf32>
    %68 = vector.multi_reduction <maximumf>, %67, %cst_40 [1] : vector<16x16xf32> to vector<16xf32>
    %69 = vector.shape_cast %68 : vector<16xf32> to vector<16x1xf32>
    %70 = vector.broadcast %69 : vector<16x1xf32> to vector<16x16xf32>
    %71 = arith.subf %67, %70 : vector<16x16xf32>
    %72 = math.exp %71 : vector<16x16xf32>
    %cst_41 = arith.constant dense<0.000000e+00> : vector<16xf32>
    %73 = vector.multi_reduction <add>, %72, %cst_41 [1] : vector<16x16xf32> to vector<16xf32>
    %74 = vector.shape_cast %73 : vector<16xf32> to vector<16x1xf32>
    %75 = tpu.reciprocal %74 {approx = true} : vector<16x1xf32> -> vector<16x1xf32>
    %76 = vector.broadcast %75 : vector<16x1xf32> to vector<16x16xf32>
    %77 = arith.mulf %72, %76 : vector<16x16xf32>
    %78 = arith.truncf %77 : vector<16x16xf32> to vector<16x16xbf16>
    %cst_42 = arith.constant dense<0.000000e+00> : vector<16x128xf32>
    %79 = tpu.matmul %78, %61, %cst_42 {dimension_numbers = #tpu.dot_dimension_numbers<[1], [0], [0], [1], [0, 0, 1, 1], [], []>} : vector<16x16xbf16>, vector<16x128xbf16>, vector<16x128xf32> -> vector<16x128xf32>
    %80 = arith.truncf %40 : vector<16x128xf32> to vector<16x128xbf16>
    %c0_43 = arith.constant 0 : index
    %c0_44 = arith.constant 0 : index
    %81 = vector.load %arg9[%c0_43, %c0_44] : memref<128x128xbf16, #tpu.memory_space<vmem>>, vector<128x128xbf16>
    %cst_45 = arith.constant dense<0.000000e+00> : vector<16x128xf32>
    %82 = tpu.matmul %80, %81, %cst_45 {dimension_numbers = #tpu.dot_dimension_numbers<[1], [0], [0], [1], [0, 0, 1, 1], [], []>} : vector<16x128xbf16>, vector<128x128xbf16>, vector<16x128xf32> -> vector<16x128xf32>
    %83 = arith.truncf %79 : vector<16x128xf32> to vector<16x128xbf16>
    %c0_46 = arith.constant 0 : index
    %c0_47 = arith.constant 0 : index
    %84 = vector.load %arg10[%c0_46, %c0_47] : memref<128x128xbf16, #tpu.memory_space<vmem>>, vector<128x128xbf16>
    %cst_48 = arith.constant dense<0.000000e+00> : vector<16x128xf32>
    %85 = tpu.matmul %83, %84, %cst_48 {dimension_numbers = #tpu.dot_dimension_numbers<[1], [0], [0], [1], [0, 0, 1, 1], [], []>} : vector<16x128xbf16>, vector<128x128xbf16>, vector<16x128xf32> -> vector<16x128xf32>
    %86 = arith.addf %82, %85 : vector<16x128xf32>
    %c0_49 = arith.constant 0 : index
    %c0_50 = arith.constant 0 : index
    %87 = vector.load %arg13[%c0_49, %c0_50] : memref<1x128xf32, #tpu.memory_space<vmem>>, vector<1x128xf32>
    %88 = vector.broadcast %87 : vector<1x128xf32> to vector<16x128xf32>
    %89 = arith.addf %86, %88 : vector<16x128xf32>
    %c0_51 = arith.constant 0 : index
    %c0_52 = arith.constant 0 : index
    %90 = vector.load %arg14[%c0_51, %c0_52] : memref<16x128xf32, #tpu.memory_space<vmem>>, vector<16x128xf32>
    tpu.vector_store %arg14[%c0_51, %c0_52], %89 {strides = array<i32>} : memref<16x128xf32, #tpu.memory_space<vmem>>, vector<16x128xf32>,
    return
  }
  func.func @transform_0(%arg0: i32) -> (i32, i32) {
    %c0_i32 = arith.constant 0 : i32
    %c0_i32_0 = arith.constant 0 : i32
    %c0_i32_1 = arith.constant 0 : i32
    return %c0_i32, %c0_i32_0 : i32, i32
  }
  func.func @transform_1(%arg0: i32) -> (i32, i32) {
    %c0_i32 = arith.constant 0 : i32
    %c0_i32_0 = arith.constant 0 : i32
    %c0_i32_1 = arith.constant 0 : i32
    return %c0_i32, %c0_i32_0 : i32, i32
  }
  func.func @transform_2(%arg0: i32) -> (i32, i32) {
    %c0_i32 = arith.constant 0 : i32
    %c0_i32_0 = arith.constant 0 : i32
    %c0_i32_1 = arith.constant 0 : i32
    return %c0_i32, %c0_i32_0 : i32, i32
  }
  func.func @transform_3(%arg0: i32) -> (i32, i32) {
    %c0_i32 = arith.constant 0 : i32
    %c0_i32_0 = arith.constant 0 : i32
    %c0_i32_1 = arith.constant 0 : i32
    return %c0_i32, %c0_i32_0 : i32, i32
  }
  func.func @transform_4(%arg0: i32) -> (i32, i32) {
    %c0_i32 = arith.constant 0 : i32
    %c0_i32_0 = arith.constant 0 : i32
    %c0_i32_1 = arith.constant 0 : i32
    return %c0_i32, %c0_i32_0 : i32, i32
  }
  func.func @transform_5(%arg0: i32) -> (i32, i32) {
    %c0_i32 = arith.constant 0 : i32
    %c0_i32_0 = arith.constant 0 : i32
    %c0_i32_1 = arith.constant 0 : i32
    return %c0_i32, %c0_i32_0 : i32, i32
  }
  func.func @transform_6(%arg0: i32) -> (i32, i32) {
    %c0_i32 = arith.constant 0 : i32
    %c0_i32_0 = arith.constant 0 : i32
    %c0_i32_1 = arith.constant 0 : i32
    return %c0_i32, %c0_i32_0 : i32, i32
  }
  func.func @transform_7(%arg0: i32) -> (i32, i32) {
    %c0_i32 = arith.constant 0 : i32
    %c0_i32_0 = arith.constant 0 : i32
    %c0_i32_1 = arith.constant 0 : i32
    return %c0_i32, %c0_i32_0 : i32, i32
  }
  func.func @transform_8(%arg0: i32) -> (i32, i32) {
    %c0_i32 = arith.constant 0 : i32
    %c0_i32_0 = arith.constant 0 : i32
    %c0_i32_1 = arith.constant 0 : i32
    return %c0_i32, %c0_i32_0 : i32, i32
  }
  func.func @transform_9(%arg0: i32) -> (i32, i32) {
    %c0_i32 = arith.constant 0 : i32
    %c0_i32_0 = arith.constant 0 : i32
    %c0_i32_1 = arith.constant 0 : i32
    return %c0_i32, %c0_i32_0 : i32, i32
  }
  func.func @transform_10(%arg0: i32) -> (i32, i32) {
    %c0_i32 = arith.constant 0 : i32
    %c0_i32_0 = arith.constant 0 : i32
    %c0_i32_1 = arith.constant 0 : i32
    return %c0_i32, %c0_i32_0 : i32, i32
  }
  func.func @transform_11(%arg0: i32) -> (i32, i32) {
    %c0_i32 = arith.constant 0 : i32
    %c0_i32_0 = arith.constant 0 : i32
    %c0_i32_1 = arith.constant 0 : i32
    return %c0_i32, %c0_i32_0 : i32, i32
  }
  func.func @transform_12(%arg0: i32) -> (i32, i32) {
    %c0_i32 = arith.constant 0 : i32
    %c0_i32_0 = arith.constant 0 : i32
    %c0_i32_1 = arith.constant 0 : i32
    return %c0_i32, %c0_i32_0 : i32, i32
  }
  func.func @transform_13(%arg0: i32) -> (i32, i32) {
    %c0_i32 = arith.constant 0 : i32
    %c0_i32_0 = arith.constant 0 : i32
    return %arg0, %c0_i32 : i32, i32
  }
}

</mosaic_0001>

<llo_original>
// kernel: tpu_custom_call.1
$region0: #{tpu_custom_call.1}
  #allocation0 [shape = 'u32[]', space=smem, size = 0x4, offset = 0x4, fixed_abs, tag = 'smem constant byte address 0x4 - core index']
  #allocation1 [shape = 'u32[144,128]{1,0:T(1,128)}', space=vmem, size = 0x12000, scoped, tag = 'internal scratch']
  %s0 = inlined_call_operand.hbm [shape: bf16[16,128], index: 0, kind: input, shape index: {}]
  %s1 = inlined_call_operand.hbm [shape: bf16[16,128], index: 1, kind: input, shape index: {}]
  %s2 = inlined_call_operand.hbm [shape: bf16[128,128], index: 2, kind: input, shape index: {}]
  %s3 = inlined_call_operand.hbm [shape: bf16[128,128], index: 3, kind: input, shape index: {}]
  %s4 = inlined_call_operand.hbm [shape: bf16[128,128], index: 4, kind: input, shape index: {}]
  %s5 = inlined_call_operand.hbm [shape: bf16[128,128], index: 5, kind: input, shape index: {}]
  %s6 = inlined_call_operand.hbm [shape: bf16[128,128], index: 6, kind: input, shape index: {}]
  %s7 = inlined_call_operand.hbm [shape: bf16[128,128], index: 7, kind: input, shape index: {}]
  %s8 = inlined_call_operand.hbm [shape: bf16[128,128], index: 8, kind: input, shape index: {}]
  %s9 = inlined_call_operand.hbm [shape: bf16[128,128], index: 9, kind: input, shape index: {}]
  %s10 = inlined_call_operand.vmem [shape: f32[3,128], index: 10, kind: input, shape index: {}]
  %s11 = inlined_call_operand.vmem [shape: f32[3,128], index: 11, kind: input, shape index: {}]
  %s12 = inlined_call_operand.vmem [shape: f32[1,128], index: 12, kind: input, shape index: {}]
  %s13 = inlined_call_operand.hbm [shape: f32[16,128], index: 13, kind: output, shape index: {}]
  %s14 = sld [smem:[#allocation0]]
  $region102: #{tpu_custom_call.1} parent=0
    _
  %s16 = ssub.s32 1, %s14
  %s17 = scalar_select 0, %s16, %s14
  $region1: #{tpu_custom_call.1} parent=0
    #allocation2 [shape = 'u8[4096]{0}', space=vmem, size = 0x1000, scoped, tag = 'input window, operand 0, single buffered']
    #allocation3 [shape = 's32[1]{0}', space=sflag, size = 0x4, scoped, tag = 'scoped memory for tpu_custom_call.1']
    #allocation4 [shape = 's32[1]{0}', space=sflag, size = 0x4, scoped, tag = 'scoped memory for tpu_custom_call.1']
    #allocation5 [shape = 'u8[4096]{0}', space=vmem, size = 0x1000, scoped, tag = 'input window, operand 1, single buffered']
    #allocation6 [shape = 's32[1]{0}', space=sflag, size = 0x4, scoped, tag = 'scoped memory for tpu_custom_call.1']
    #allocation7 [shape = 'u8[32768]{0}', space=vmem, size = 0x8000, scoped, tag = 'input window, operand 2, single buffered']
    #allocation8 [shape = 'u8[32768]{0}', space=vmem, size = 0x8000, scoped, tag = 'input window, operand 3, single buffered']
    #allocation9 [shape = 's32[1]{0}', space=sflag, size = 0x4, scoped, tag = 'scoped memory for tpu_custom_call.1']
    #allocation10 [shape = 'u8[32768]{0}', space=vmem, size = 0x8000, scoped, tag = 'input window, operand 4, single buffered']
    #allocation11 [shape = 'u8[32768]{0}', space=vmem, size = 0x8000, scoped, tag = 'input window, operand 5, single buffered']
    #allocation12 [shape = 's32[1]{0}', space=sflag, size = 0x4, scoped, tag = 'scoped memory for tpu_custom_call.1']
    #allocation13 [shape = 'u8[32768]{0}', space=vmem, size = 0x8000, scoped, tag = 'input window, operand 6, single buffered']
    #allocation14 [shape = 'u8[32768]{0}', space=vmem, size = 0x8000, scoped, tag = 'input window, operand 7, single buffered']
    #allocation15 [shape = 's32[1]{0}', space=sflag, size = 0x4, scoped, tag = 'scoped memory for tpu_custom_call.1']
    #allocation16 [shape = 'u8[32768]{0}', space=vmem, size = 0x8000, scoped, tag = 'input window, operand 8, single buffered']
    #allocation17 [shape = 'u8[32768]{0}', space=vmem, size = 0x8000, scoped, tag = 'input window, operand 9, single buffered']
    #allocation18 [shape = 's32[1]{0}', space=sflag, size = 0x4, scoped, tag = 'scoped memory for tpu_custom_call.1']
    #allocation19 [shape = 'u8[8192]{0}', space=vmem, size = 0x2000, scoped, tag = 'output window, operand 0, single buffered']
    %18 = vsyncpa [#allocation3], 0
    %19 = vsyncpa [#allocation6], 0
    %20 = vsyncpa [#allocation9], 0
    %21 = vsyncpa [#allocation12], 0
    %22 = vsyncpa [#allocation15], 0
    %23 = vsyncpa [#allocation18], 0
    %24 = vsyncpa [#allocation4], 0
    // Predicated region
    $region2: #{tpu_custom_call.1} parent=1 // pred_check
      _
    $region3: #{tpu_custom_call.1} parent=1 // pred_check_branch
      %26 = sbr.rel (0) target = $region5
    $region4: #{tpu_custom_call.1} parent=1 // pred_region
      %s28 = ssub.s32 128, 128
      %29 = vsyncadd [#allocation3], %s28
      %s30 = sshll.u32 [#allocation2], 4
      %s31 = int_to_ptr.vmem [resolvable:$true] %s30
      %36 = dma.hbm_to_vmem [thread:$0]  %s0, 128, %s31, [#allocation3], 64, 64, 4
    $region5: #{tpu_custom_call.1} parent=1 // pred_fallthru
      _
    // Predicated region
    $region6: #{tpu_custom_call.1} parent=1 // pred_check
      _
    $region7: #{tpu_custom_call.1} parent=1 // pred_check_branch
      %38 = sbr.rel (0) target = $region9
    $region8: #{tpu_custom_call.1} parent=1 // pred_region
      %s40 = ssub.s32 128, 128
      %41 = vsyncadd [#allocation6], %s40
      %s42 = sshll.u32 [#allocation5], 4
      %s43 = int_to_ptr.vmem [resolvable:$true] %s42
      %48 = dma.hbm_to_vmem [thread:$0]  %s1, 128, %s43, [#allocation6], 64, 64, 4
    $region9: #{tpu_custom_call.1} parent=1 // pred_fallthru
      _
    // Predicated region
    $region10: #{tpu_custom_call.1} parent=1 // pred_check
      _
    $region11: #{tpu_custom_call.1} parent=1 // pred_check_branch
      %50 = sbr.rel (0) target = $region13
    $region12: #{tpu_custom_call.1} parent=1 // pred_region
      %s52 = ssub.s32 1024, 1024
      %53 = vsyncadd [#allocation6], %s52
      %s54 = sshll.u32 [#allocation7], 4
      %s55 = int_to_ptr.vmem [resolvable:$true] %s54
      %60 = dma.hbm_to_vmem [thread:$0]  %s2, 1024, %s55, [#allocation6], 64, 64, 4
    $region13: #{tpu_custom_call.1} parent=1 // pred_fallthru
      _
    // Predicated region
    $region14: #{tpu_custom_call.1} parent=1 // pred_check
      _
    $region15: #{tpu_custom_call.1} parent=1 // pred_check_branch
      %62 = sbr.rel (0) target = $region17
    $region16: #{tpu_custom_call.1} parent=1 // pred_region
      %s64 = ssub.s32 1024, 1024
      %65 = vsyncadd [#allocation9], %s64
      %s66 = sshll.u32 [#allocation8], 4
      %s67 = int_to_ptr.vmem [resolvable:$true] %s66
      %72 = dma.hbm_to_vmem [thread:$0]  %s3, 1024, %s67, [#allocation9], 64, 64, 4
    $region17: #{tpu_custom_call.1} parent=1 // pred_fallthru
      _
    // Predicated region
    $region18: #{tpu_custom_call.1} parent=1 // pred_check
      _
    $region19: #{tpu_custom_call.1} parent=1 // pred_check_branch
      %74 = sbr.rel (0) target = $region21
    $region20: #{tpu_custom_call.1} parent=1 // pred_region
      %s76 = ssub.s32 1024, 1024
      %77 = vsyncadd [#allocation9], %s76
      %s78 = sshll.u32 [#allocation10], 4
      %s79 = int_to_ptr.vmem [resolvable:$true] %s78
      %84 = dma.hbm_to_vmem [thread:$0]  %s4, 1024, %s79, [#allocation9], 64, 64, 4
    $region21: #{tpu_custom_call.1} parent=1 // pred_fallthru
      _
    // Predicated region
    $region22: #{tpu_custom_call.1} parent=1 // pred_check
      _
    $region23: #{tpu_custom_call.1} parent=1 // pred_check_branch
      %86 = sbr.rel (0) target = $region25
    $region24: #{tpu_custom_call.1} parent=1 // pred_region
      %s88 = ssub.s32 1024, 1024
      %89 = vsyncadd [#allocation12], %s88
      %s90 = sshll.u32 [#allocation11], 4
      %s91 = int_to_ptr.vmem [resolvable:$true] %s90
      %96 = dma.hbm_to_vmem [thread:$0]  %s5, 1024, %s91, [#allocation12], 64, 64, 4
    $region25: #{tpu_custom_call.1} parent=1 // pred_fallthru
      _
    // Predicated region
    $region26: #{tpu_custom_call.1} parent=1 // pred_check
      _
    $region27: #{tpu_custom_call.1} parent=1 // pred_check_branch
      %98 = sbr.rel (0) target = $region29
    $region28: #{tpu_custom_call.1} parent=1 // pred_region
      %s100 = ssub.s32 1024, 1024
      %101 = vsyncadd [#allocation12], %s100
      %s102 = sshll.u32 [#allocation13], 4
      %s103 = int_to_ptr.vmem [resolvable:$true] %s102
      %108 = dma.hbm_to_vmem [thread:$0]  %s6, 1024, %s103, [#allocation12], 64, 64, 4
    $region29: #{tpu_custom_call.1} parent=1 // pred_fallthru
      _
    // Predicated region
    $region30: #{tpu_custom_call.1} parent=1 // pred_check
      _
    $region31: #{tpu_custom_call.1} parent=1 // pred_check_branch
      %110 = sbr.rel (0) target = $region33
    $region32: #{tpu_custom_call.1} parent=1 // pred_region
      %s112 = ssub.s32 1024, 1024
      %113 = vsyncadd [#allocation15], %s112
      %s114 = sshll.u32 [#allocation14], 4
      %s115 = int_to_ptr.vmem [resolvable:$true] %s114
      %120 = dma.hbm_to_vmem [thread:$0]  %s7, 1024, %s115, [#allocation15], 64, 64, 4
    $region33: #{tpu_custom_call.1} parent=1 // pred_fallthru
      _
    // Predicated region
    $region34: #{tpu_custom_call.1} parent=1 // pred_check
      _
    $region35: #{tpu_custom_call.1} parent=1 // pred_check_branch
      %122 = sbr.rel (0) target = $region37
    $region36: #{tpu_custom_call.1} parent=1 // pred_region
      %s124 = ssub.s32 1024, 1024
      %125 = vsyncadd [#allocation15], %s124
      %s126 = sshll.u32 [#allocation16], 4
      %s127 = int_to_ptr.vmem [resolvable:$true] %s126
      %132 = dma.hbm_to_vmem [thread:$0]  %s8, 1024, %s127, [#allocation15], 64, 64, 4
    $region37: #{tpu_custom_call.1} parent=1 // pred_fallthru
      _
    // Predicated region
    $region38: #{tpu_custom_call.1} parent=1 // pred_check
      _
    $region39: #{tpu_custom_call.1} parent=1 // pred_check_branch
      %134 = sbr.rel (0) target = $region41
    $region40: #{tpu_custom_call.1} parent=1 // pred_region
      %s136 = ssub.s32 1024, 1024
      %137 = vsyncadd [#allocation18], %s136
      %s138 = sshll.u32 [#allocation17], 4
      %s139 = int_to_ptr.vmem [resolvable:$true] %s138
      %144 = dma.hbm_to_vmem [thread:$0]  %s9, 1024, %s139, [#allocation18], 64, 64, 4
    $region41: #{tpu_custom_call.1} parent=1 // pred_fallthru
      _
    // Predicated region
    $region42: #{tpu_custom_call.1} parent=1 // pred_check
      _
    $region43: #{tpu_custom_call.1} parent=1 // pred_check_branch
      %146 = sbr.rel (0) target = $region45
    $region44: #{tpu_custom_call.1} parent=1 // pred_region
      _
    $region45: #{tpu_custom_call.1} parent=1 // pred_fallthru
      _
    // Predicated region
    $region46: #{tpu_custom_call.1} parent=1 // pred_check
      _
    $region47: #{tpu_custom_call.1} parent=1 // pred_check_branch
      %148 = sbr.rel (0) target = $region49
    $region48: #{tpu_custom_call.1} parent=1 // pred_region
      _
    $region49: #{tpu_custom_call.1} parent=1 // pred_fallthru
      _
    // Predicated region
    $region50: #{tpu_custom_call.1} parent=1 // pred_check
      _
    $region51: #{tpu_custom_call.1} parent=1 // pred_check_branch
      %150 = sbr.rel (0) target = $region53
    $region52: #{tpu_custom_call.1} parent=1 // pred_region
      _
    $region53: #{tpu_custom_call.1} parent=1 // pred_fallthru
      _
    // Predicated region
    $region54: #{tpu_custom_call.1} parent=1 // pred_check
      _
    $region55: #{tpu_custom_call.1} parent=1 // pred_check_branch
      %152 = sbr.rel (0) target = $region57
    $region56: #{tpu_custom_call.1} parent=1 // pred_region
      %153 = dma.done [#allocation3], 128
    $region57: #{tpu_custom_call.1} parent=1 // pred_fallthru
      _
    // Predicated region
    $region58: #{tpu_custom_call.1} parent=1 // pred_check
      _
    $region59: #{tpu_custom_call.1} parent=1 // pred_check_branch
      %155 = sbr.rel (0) target = $region61
    $region60: #{tpu_custom_call.1} parent=1 // pred_region
      %156 = dma.done [#allocation6], 128
    $region61: #{tpu_custom_call.1} parent=1 // pred_fallthru
      _
    // Predicated region
    $region62: #{tpu_custom_call.1} parent=1 // pred_check
      _
    $region63: #{tpu_custom_call.1} parent=1 // pred_check_branch
      %158 = sbr.rel (0) target = $region65
    $region64: #{tpu_custom_call.1} parent=1 // pred_region
      %159 = dma.done [#allocation6], 1024
    $region65: #{tpu_custom_call.1} parent=1 // pred_fallthru
      _
    // Predicated region
    $region66: #{tpu_custom_call.1} parent=1 // pred_check
      _
    $region67: #{tpu_custom_call.1} parent=1 // pred_check_branch
      %161 = sbr.rel (0) target = $region69
    $region68: #{tpu_custom_call.1} parent=1 // pred_region
      %162 = dma.done [#allocation9], 1024
    $region69: #{tpu_custom_call.1} parent=1 // pred_fallthru
      _
    // Predicated region
    $region70: #{tpu_custom_call.1} parent=1 // pred_check
      _
    $region71: #{tpu_custom_call.1} parent=1 // pred_check_branch
      %164 = sbr.rel (0) target = $region73
    $region72: #{tpu_custom_call.1} parent=1 // pred_region
      %165 = dma.done [#allocation9], 1024
    $region73: #{tpu_custom_call.1} parent=1 // pred_fallthru
      _
    // Predicated region
    $region74: #{tpu_custom_call.1} parent=1 // pred_check
      _
    $region75: #{tpu_custom_call.1} parent=1 // pred_check_branch
      %167 = sbr.rel (0) target = $region77
    $region76: #{tpu_custom_call.1} parent=1 // pred_region
      %168 = dma.done [#allocation12], 1024
    $region77: #{tpu_custom_call.1} parent=1 // pred_fallthru
      _
    // Predicated region
    $region78: #{tpu_custom_call.1} parent=1 // pred_check
      _
    $region79: #{tpu_custom_call.1} parent=1 // pred_check_branch
      %170 = sbr.rel (0) target = $region81
    $region80: #{tpu_custom_call.1} parent=1 // pred_region
      %171 = dma.done [#allocation12], 1024
    $region81: #{tpu_custom_call.1} parent=1 // pred_fallthru
      _
    // Predicated region
    $region82: #{tpu_custom_call.1} parent=1 // pred_check
      _
    $region83: #{tpu_custom_call.1} parent=1 // pred_check_branch
      %173 = sbr.rel (0) target = $region85
    $region84: #{tpu_custom_call.1} parent=1 // pred_region
      %174 = dma.done [#allocation15], 1024
    $region85: #{tpu_custom_call.1} parent=1 // pred_fallthru
      _
    // Predicated region
    $region86: #{tpu_custom_call.1} parent=1 // pred_check
      _
    $region87: #{tpu_custom_call.1} parent=1 // pred_check_branch
      %176 = sbr.rel (0) target = $region89
    $region88: #{tpu_custom_call.1} parent=1 // pred_region
      %177 = dma.done [#allocation15], 1024
    $region89: #{tpu_custom_call.1} parent=1 // pred_fallthru
      _
    // Predicated region
    $region90: #{tpu_custom_call.1} parent=1 // pred_check
      _
    $region91: #{tpu_custom_call.1} parent=1 // pred_check_branch
      %179 = sbr.rel (0) target = $region93
    $region92: #{tpu_custom_call.1} parent=1 // pred_region
      %180 = dma.done [#allocation18], 1024
    $region93: #{tpu_custom_call.1} parent=1 // pred_fallthru
      _
    %s182 = smul.u32 0, 16
    %s183 = sshra.s32 %s182, 3
    %s184 = sand.u32 %s182, 7
    %s185 = smul.addr %s183, 4
    %s186 = scalar_lea.vmem [#allocation2], %s185
    %v187 = vld [vmem:[%s186] sm:$0xf]
    %v188 = vld [vmem:[%s186 + $0x4] sm:$0xf]
    %v189 = vld [vmem:[#allocation2] sm:$0xf]
    %v190 = vld [vmem:[#allocation2 + $0x4] sm:$0xf]
    %v191 = vld [vmem:[#allocation7] sm:$0xf]
    %v192 = vld [vmem:[#allocation7 + $0x4] sm:$0xf]
    %v193 = vld [vmem:[#allocation7 + $0x8] sm:$0xf]
    %v194 = vld [vmem:[#allocation7 + $0xc] sm:$0xf]
    %v195 = vld [vmem:[#allocation7 + $0x10] sm:$0xf]
    %v196 = vld [vmem:[#allocation7 + $0x14] sm:$0xf]
    %v197 = vld [vmem:[#allocation7 + $0x18] sm:$0xf]
    %v198 = vld [vmem:[#allocation7 + $0x1c] sm:$0xf]
    %v199 = vld [vmem:[#allocation7 + $0x20] sm:$0xf]
    %v200 = vld [vmem:[#allocation7 + $0x24] sm:$0xf]
    %v201 = vld [vmem:[#allocation7 + $0x28] sm:$0xf]
    %v202 = vld [vmem:[#allocation7 + $0x2c] sm:$0xf]
    %v203 = vld [vmem:[#allocation7 + $0x30] sm:$0xf]
    %v204 = vld [vmem:[#allocation7 + $0x34] sm:$0xf]
    %v205 = vld [vmem:[#allocation7 + $0x38] sm:$0xf]
    %v206 = vld [vmem:[#allocation7 + $0x3c] sm:$0xf]
    %v207 = vld [vmem:[%s10] sm:$0x1]
    %v208 = vlaneseq
    %v209 = vshrl.u32 %v208, 7
    %v210 = vsub.s32 0, %v209
    %v211 = vrot.slane %v207, %v210
    %v214 = vunpack.c.l.b16 %v187
    %v215 = vunpack.c.l.b16 %v188
    %v216 = vpack.c.b16 %v215, %v214
    %v234 = vunpack.c.l.b16 %v191
    %v235 = vunpack.c.l.b16 %v192
    %v236 = vunpack.c.l.b16 %v193
    %v237 = vunpack.c.l.b16 %v194
    %v238 = vunpack.c.l.b16 %v195
    %v239 = vunpack.c.l.b16 %v196
    %v240 = vunpack.c.l.b16 %v197
    %v241 = vunpack.c.l.b16 %v198
    %v242 = vunpack.c.l.b16 %v199
    %v243 = vunpack.c.l.b16 %v200
    %v244 = vunpack.c.l.b16 %v201
    %v245 = vunpack.c.l.b16 %v202
    %v246 = vunpack.c.l.b16 %v203
    %v247 = vunpack.c.l.b16 %v204
    %v248 = vunpack.c.l.b16 %v205
    %v249 = vunpack.c.l.b16 %v206
    %v250 = vpack.c.b16 %v235, %v234
    %v251 = vpack.c.b16 %v237, %v236
    %v252 = vpack.c.b16 %v239, %v238
    %v253 = vpack.c.b16 %v241, %v240
    %v254 = vpack.c.b16 %v243, %v242
    %v255 = vpack.c.b16 %v245, %v244
    %v256 = vpack.c.b16 %v247, %v246
    %v257 = vpack.c.b16 %v249, %v248
    %266 = vmatprep.subr.bf16.mxu0 0
    %267 = vmatpush1.bf16.msra.mxu0 %v257
    %268 = vmatprep.subr.bf16.mxu0 0
    %269 = vmatpush1.bf16.msra.mxu0 %v256
    %270 = vmatprep.subr.bf16.mxu0 0
    %271 = vmatpush1.bf16.msra.mxu0 %v255
    %272 = vmatprep.subr.bf16.mxu0 0
    %273 = vmatpush1.bf16.msra.mxu0 %v254
    %274 = vmatprep.subr.bf16.mxu0 0
    %275 = vmatpush1.bf16.msra.mxu0 %v253
    %276 = vmatprep.subr.bf16.mxu0 0
    %277 = vmatpush1.bf16.msra.mxu0 %v252
    %278 = vmatprep.subr.bf16.mxu0 0
    %279 = vmatpush1.bf16.msra.mxu0 %v251
    %280 = vmatprep.subr.bf16.mxu0 0
    %281 = vmatpush1.bf16.msra.mxu0 %v250
    %282 = vmatprep.subr.bf16.mxu0 0
    %283 = vmatpush2.bf16.msra.mxu0 0
    %284 = vmatprep.subr.bf16.mxu0 0
    %285 = vmatpush2.bf16.msra.mxu0 0
    %286 = vmatprep.subr.bf16.mxu0 0
    %287 = vmatpush2.bf16.msra.mxu0 0
    %288 = vmatprep.subr.bf16.mxu0 0
    %289 = vmatpush2.bf16.msra.mxu0 0
    %290 = vmatprep.subr.bf16.mxu0 0
    %291 = vmatpush2.bf16.msra.mxu0 0
    %292 = vmatprep.subr.bf16.mxu0 0
    %293 = vmatpush2.bf16.msra.mxu0 0
    %294 = vmatprep.subr.bf16.mxu0 0
    %295 = vmatpush2.bf16.msra.mxu0 0
    %296 = vmatprep.subr.bf16.mxu0 0
    %297 = vmatpush2.bf16.msra.mxu0 0
    %298 = vmatprep.mubr.bf16.mxu0 0
    %299 = vmatmul.mubr.bf16.gmra.mxu0 %v216
    %v300 = vpop.f32.mrf.mxu0
    %v301 = vadd.f32 %v211, %v300
    %v302 = vpop.f32.mrf.mxu0
    %v303 = vpop.f32.mrf.mxu0
    %v304 = vadd.f32 %v211, %v303
    %v305 = vpop.f32.mrf.mxu0
    %306 = vdwg.mxu0
    %v307 = vpack.c.bf16 %v304, %v301
    %v308 = vld [vmem:[#allocation8] sm:$0xf]
    %v309 = vld [vmem:[#allocation8 + $0x4] sm:$0xf]
    %v310 = vld [vmem:[#allocation8 + $0x8] sm:$0xf]
    %v311 = vld [vmem:[#allocation8 + $0xc] sm:$0xf]
    %v312 = vld [vmem:[#allocation8 + $0x10] sm:$0xf]
    %v313 = vld [vmem:[#allocation8 + $0x14] sm:$0xf]
    %v314 = vld [vmem:[#allocation8 + $0x18] sm:$0xf]
    %v315 = vld [vmem:[#allocation8 + $0x1c] sm:$0xf]
    %v316 = vld [vmem:[#allocation8 + $0x20] sm:$0xf]
    %v317 = vld [vmem:[#allocation8 + $0x24] sm:$0xf]
    %v318 = vld [vmem:[#allocation8 + $0x28] sm:$0xf]
    %v319 = vld [vmem:[#allocation8 + $0x2c] sm:$0xf]
    %v320 = vld [vmem:[#allocation8 + $0x30] sm:$0xf]
    %v321 = vld [vmem:[#allocation8 + $0x34] sm:$0xf]
    %v322 = vld [vmem:[#allocation8 + $0x38] sm:$0xf]
    %v323 = vld [vmem:[#allocation8 + $0x3c] sm:$0xf]
    %v324 = vld [vmem:[%s10 + $0x1] sm:$0x1]
    %v325 = vlaneseq
    %v326 = vshrl.u32 %v325, 7
    %v327 = vsub.s32 0, %v326
    %v328 = vrot.slane %v324, %v327
    %v331 = vunpack.c.l.b16 %v189
    %v332 = vunpack.c.l.b16 %v190
    %v333 = vpack.c.b16 %v332, %v331
    %v351 = vunpack.c.l.b16 %v308
    %v352 = vunpack.c.l.b16 %v309
    %v353 = vunpack.c.l.b16 %v310
    %v354 = vunpack.c.l.b16 %v311
    %v355 = vunpack.c.l.b16 %v312
    %v356 = vunpack.c.l.b16 %v313
    %v357 = vunpack.c.l.b16 %v314
    %v358 = vunpack.c.l.b16 %v315
    %v359 = vunpack.c.l.b16 %v316
    %v360 = vunpack.c.l.b16 %v317
    %v361 = vunpack.c.l.b16 %v318
    %v362 = vunpack.c.l.b16 %v319
    %v363 = vunpack.c.l.b16 %v320
    %v364 = vunpack.c.l.b16 %v321
    %v365 = vunpack.c.l.b16 %v322
    %v366 = vunpack.c.l.b16 %v323
    %v367 = vpack.c.b16 %v352, %v351
    %v368 = vpack.c.b16 %v354, %v353
    %v369 = vpack.c.b16 %v356, %v355
    %v370 = vpack.c.b16 %v358, %v357
    %v371 = vpack.c.b16 %v360, %v359
    %v372 = vpack.c.b16 %v362, %v361
    %v373 = vpack.c.b16 %v364, %v363
    %v374 = vpack.c.b16 %v366, %v365
    %383 = vmatprep.subr.bf16.mxu0 0
    %384 = vmatpush1.bf16.msra.mxu0 %v374
    %385 = vmatprep.subr.bf16.mxu0 0
    %386 = vmatpush1.bf16.msra.mxu0 %v373
    %387 = vmatprep.subr.bf16.mxu0 0
    %388 = vmatpush1.bf16.msra.mxu0 %v372
    %389 = vmatprep.subr.bf16.mxu0 0
    %390 = vmatpush1.bf16.msra.mxu0 %v371
    %391 = vmatprep.subr.bf16.mxu0 0
    %392 = vmatpush1.bf16.msra.mxu0 %v370
    %393 = vmatprep.subr.bf16.mxu0 0
    %394 = vmatpush1.bf16.msra.mxu0 %v369
    %395 = vmatprep.subr.bf16.mxu0 0
    %396 = vmatpush1.bf16.msra.mxu0 %v368
    %397 = vmatprep.subr.bf16.mxu0 0
    %398 = vmatpush1.bf16.msra.mxu0 %v367
    %399 = vmatprep.subr.bf16.mxu0 0
    %400 = vmatpush2.bf16.msra.mxu0 0
    %401 = vmatprep.subr.bf16.mxu0 0
    %402 = vmatpush2.bf16.msra.mxu0 0
    %403 = vmatprep.subr.bf16.mxu0 0
    %404 = vmatpush2.bf16.msra.mxu0 0
    %405 = vmatprep.subr.bf16.mxu0 0
    %406 = vmatpush2.bf16.msra.mxu0 0
    %407 = vmatprep.subr.bf16.mxu0 0
    %408 = vmatpush2.bf16.msra.mxu0 0
    %409 = vmatprep.subr.bf16.mxu0 0
    %410 = vmatpush2.bf16.msra.mxu0 0
    %411 = vmatprep.subr.bf16.mxu0 0
    %412 = vmatpush2.bf16.msra.mxu0 0
    %413 = vmatprep.subr.bf16.mxu0 0
    %414 = vmatpush2.bf16.msra.mxu0 0
    %415 = vmatprep.mubr.bf16.mxu0 0
    %416 = vmatmul.mubr.bf16.gmra.mxu0 %v333
    %v417 = vpop.f32.mrf.mxu0
    %v418 = vadd.f32 %v328, %v417
    %v419 = vpop.f32.mrf.mxu0
    %v420 = vpop.f32.mrf.mxu0
    %v421 = vadd.f32 %v328, %v420
    %v422 = vpop.f32.mrf.mxu0
    %423 = vdwg.mxu0
    %v424 = vpack.c.bf16 %v421, %v418
    %v425 = vld [vmem:[#allocation10] sm:$0xf]
    %v426 = vld [vmem:[#allocation10 + $0x4] sm:$0xf]
    %v427 = vld [vmem:[#allocation10 + $0x8] sm:$0xf]
    %v428 = vld [vmem:[#allocation10 + $0xc] sm:$0xf]
    %v429 = vld [vmem:[#allocation10 + $0x10] sm:$0xf]
    %v430 = vld [vmem:[#allocation10 + $0x14] sm:$0xf]
    %v431 = vld [vmem:[#allocation10 + $0x18] sm:$0xf]
    %v432 = vld [vmem:[#allocation10 + $0x1c] sm:$0xf]
    %v433 = vld [vmem:[#allocation10 + $0x20] sm:$0xf]
    %v434 = vld [vmem:[#allocation10 + $0x24] sm:$0xf]
    %v435 = vld [vmem:[#allocation10 + $0x28] sm:$0xf]
    %v436 = vld [vmem:[#allocation10 + $0x2c] sm:$0xf]
    %v437 = vld [vmem:[#allocation10 + $0x30] sm:$0xf]
    %v438 = vld [vmem:[#allocation10 + $0x34] sm:$0xf]
    %v439 = vld [vmem:[#allocation10 + $0x38] sm:$0xf]
    %v440 = vld [vmem:[#allocation10 + $0x3c] sm:$0xf]
    %v441 = vld [vmem:[%s10 + $0x2] sm:$0x1]
    %v442 = vlaneseq
    %v443 = vshrl.u32 %v442, 7
    %v444 = vsub.s32 0, %v443
    %v445 = vrot.slane %v441, %v444
    %v462 = vunpack.c.l.b16 %v425
    %v463 = vunpack.c.l.b16 %v426
    %v464 = vunpack.c.l.b16 %v427
    %v465 = vunpack.c.l.b16 %v428
    %v466 = vunpack.c.l.b16 %v429
    %v467 = vunpack.c.l.b16 %v430
    %v468 = vunpack.c.l.b16 %v431
    %v469 = vunpack.c.l.b16 %v432
    %v470 = vunpack.c.l.b16 %v433
    %v471 = vunpack.c.l.b16 %v434
    %v472 = vunpack.c.l.b16 %v435
    %v473 = vunpack.c.l.b16 %v436
    %v474 = vunpack.c.l.b16 %v437
    %v475 = vunpack.c.l.b16 %v438
    %v476 = vunpack.c.l.b16 %v439
    %v477 = vunpack.c.l.b16 %v440
    %v478 = vpack.c.b16 %v463, %v462
    %v479 = vpack.c.b16 %v465, %v464
    %v480 = vpack.c.b16 %v467, %v466
    %v481 = vpack.c.b16 %v469, %v468
    %v482 = vpack.c.b16 %v471, %v470
    %v483 = vpack.c.b16 %v473, %v472
    %v484 = vpack.c.b16 %v475, %v474
    %v485 = vpack.c.b16 %v477, %v476
    %494 = vmatprep.subr.bf16.mxu0 0
    %495 = vmatpush1.bf16.msra.mxu0 %v485
    %496 = vmatprep.subr.bf16.mxu0 0
    %497 = vmatpush1.bf16.msra.mxu0 %v484
    %498 = vmatprep.subr.bf16.mxu0 0
    %499 = vmatpush1.bf16.msra.mxu0 %v483
    %500 = vmatprep.subr.bf16.mxu0 0
    %501 = vmatpush1.bf16.msra.mxu0 %v482
    %502 = vmatprep.subr.bf16.mxu0 0
    %503 = vmatpush1.bf16.msra.mxu0 %v481
    %504 = vmatprep.subr.bf16.mxu0 0
    %505 = vmatpush1.bf16.msra.mxu0 %v480
    %506 = vmatprep.subr.bf16.mxu0 0
    %507 = vmatpush1.bf16.msra.mxu0 %v479
    %508 = vmatprep.subr.bf16.mxu0 0
    %509 = vmatpush1.bf16.msra.mxu0 %v478
    %510 = vmatprep.subr.bf16.mxu0 0
    %511 = vmatpush2.bf16.msra.mxu0 0
    %512 = vmatprep.subr.bf16.mxu0 0
    %513 = vmatpush2.bf16.msra.mxu0 0
    %514 = vmatprep.subr.bf16.mxu0 0
    %515 = vmatpush2.bf16.msra.mxu0 0
    %516 = vmatprep.subr.bf16.mxu0 0
    %517 = vmatpush2.bf16.msra.mxu0 0
    %518 = vmatprep.subr.bf16.mxu0 0
    %519 = vmatpush2.bf16.msra.mxu0 0
    %520 = vmatprep.subr.bf16.mxu0 0
    %521 = vmatpush2.bf16.msra.mxu0 0
    %522 = vmatprep.subr.bf16.mxu0 0
    %523 = vmatpush2.bf16.msra.mxu0 0
    %524 = vmatprep.subr.bf16.mxu0 0
    %525 = vmatpush2.bf16.msra.mxu0 0
    %526 = vmatprep.mubr.bf16.mxu0 0
    %527 = vmatmul.mubr.bf16.gmra.mxu0 %v333
    %v528 = vpop.f32.mrf.mxu0
    %v529 = vadd.f32 %v445, %v528
    %v530 = vpop.f32.mrf.mxu0
    %v531 = vpop.f32.mrf.mxu0
    %v532 = vadd.f32 %v445, %v531
    %v533 = vpop.f32.mrf.mxu0
    %534 = vdwg.mxu0
    %v535 = vpack.c.bf16 %v532, %v529
    %536 = vmatprep.subr.bf16.mxu0 0
    %537 = vmatpush1.bf16.xpose.msra.mxu0 0
    %538 = vmatprep.subr.bf16.mxu0 0
    %539 = vmatpush1.bf16.xpose.msra.mxu0 0
    %540 = vmatprep.subr.bf16.mxu0 0
    %541 = vmatpush1.bf16.xpose.msra.mxu0 0
    %542 = vmatprep.subr.bf16.mxu0 0
    %543 = vmatpush1.bf16.xpose.msra.mxu0 0
    %544 = vmatprep.subr.bf16.mxu0 0
    %545 = vmatpush1.bf16.xpose.msra.mxu0 0
    %546 = vmatprep.subr.bf16.mxu0 0
    %547 = vmatpush1.bf16.xpose.msra.mxu0 0
    %548 = vmatprep.subr.bf16.mxu0 0
    %549 = vmatpush1.bf16.xpose.msra.mxu0 0
    %550 = vmatprep.subr.bf16.mxu0 0
    %551 = vmatpush1.bf16.xpose.msra.mxu0 %v424
    %552 = vmatprep.subr.bf16.mxu0 0
    %553 = vmatpush2.bf16.xpose.msra.mxu0 0
    %554 = vmatprep.subr.bf16.mxu0 0
    %555 = vmatpush2.bf16.xpose.msra.mxu0 0
    %556 = vmatprep.subr.bf16.mxu0 0
    %557 = vmatpush2.bf16.xpose.msra.mxu0 0
    %558 = vmatprep.subr.bf16.mxu0 0
    %559 = vmatpush2.bf16.xpose.msra.mxu0 0
    %560 = vmatprep.subr.bf16.mxu0 0
    %561 = vmatpush2.bf16.xpose.msra.mxu0 0
    %562 = vmatprep.subr.bf16.mxu0 0
    %563 = vmatpush2.bf16.xpose.msra.mxu0 0
    %564 = vmatprep.subr.bf16.mxu0 0
    %565 = vmatpush2.bf16.xpose.msra.mxu0 0
    %566 = vmatprep.subr.bf16.mxu0 0
    %567 = vmatpush2.bf16.xpose.msra.mxu0 0
    %568 = vmatprep.mubr.bf16.mxu0 0
    %569 = vmatmul.mubr.bf16.gmra.mxu0 %v307
    %v570 = vpop.f32.mrf.mxu0
    %v571 = vadd.f32 0.0, %v570
    %v572 = vpop.f32.mrf.mxu0
    %v573 = vpop.f32.mrf.mxu0
    %v574 = vadd.f32 0.0, %v573
    %v575 = vpop.f32.mrf.mxu0
    %576 = vdwg.mxu0
    %v577 = vlaneseq
    %v578 = vand.u32 %v577, 127
    %vm579 = vcmp.lt.s32.totalorder %v578, 2
    %v580 = vsel %vm579, %v571, -1e+30
    %v581 = vsel %vm579, %v574, -1e+30
    %vm582 = vcmask 130048
    %v583 = vsel %vm582, %v580, -inf
    %584 = vmax.xlane.f32.xlu0 %v583
    %v585 = vpop.xlane.xlu0 %584
    %v586 = vsel %vm582, %v581, -inf
    %587 = vmax.xlane.f32.xlu0 %v586
    %v588 = vpop.xlane.xlu0 %587
    %v589 = vsub.f32 %v580, %v585
    %v590 = vsub.f32 %v581, %v588
    %v591 = vmul.f32 %v589, 1.442695
    %v592 = vpow.pop %v591
    %v593 = vmul.f32 %v590, 1.442695
    %v594 = vpow.pop %v593
    %v595 = vsel %vm582, %v592, 0.0
    %596 = vadd.xlane.f32.xlu0 %v595
    %v597 = vpop.xlane.xlu0 %596
    %v598 = vsel %vm582, %v594, 0.0
    %599 = vadd.xlane.f32.xlu0 %v598
    %v600 = vpop.xlane.xlu0 %599
    %v601 = vrcp.pop %v597
    %v602 = vrcp.pop %v600
    %v603 = vmul.f32 %v592, %v601
    %v604 = vmul.f32 %v594, %v602
    %v605 = vpack.c.bf16 %v604, %v603
    %v607 = vsel %vm582, %v605, 0
    %609 = vmatprep.subr.bf16.mxu0 0
    %610 = vmatpush1.bf16.msra.mxu0 0
    %611 = vmatprep.subr.bf16.mxu0 0
    %612 = vmatpush1.bf16.msra.mxu0 0
    %613 = vmatprep.subr.bf16.mxu0 0
    %614 = vmatpush1.bf16.msra.mxu0 0
    %615 = vmatprep.subr.bf16.mxu0 0
    %616 = vmatpush1.bf16.msra.mxu0 0
    %617 = vmatprep.subr.bf16.mxu0 0
    %618 = vmatpush1.bf16.msra.mxu0 0
    %619 = vmatprep.subr.bf16.mxu0 0
    %620 = vmatpush1.bf16.msra.mxu0 0
    %621 = vmatprep.subr.bf16.mxu0 0
    %622 = vmatpush1.bf16.msra.mxu0 0
    %623 = vmatprep.subr.bf16.mxu0 0
    %624 = vmatpush1.bf16.msra.mxu0 %v535
    %625 = vmatprep.subr.bf16.mxu0 0
    %626 = vmatpush2.bf16.msra.mxu0 0
    %627 = vmatprep.subr.bf16.mxu0 0
    %628 = vmatpush2.bf16.msra.mxu0 0
    %629 = vmatprep.subr.bf16.mxu0 0
    %630 = vmatpush2.bf16.msra.mxu0 0
    %631 = vmatprep.subr.bf16.mxu0 0
    %632 = vmatpush2.bf16.msra.mxu0 0
    %633 = vmatprep.subr.bf16.mxu0 0
    %634 = vmatpush2.bf16.msra.mxu0 0
    %635 = vmatprep.subr.bf16.mxu0 0
    %636 = vmatpush2.bf16.msra.mxu0 0
    %637 = vmatprep.subr.bf16.mxu0 0
    %638 = vmatpush2.bf16.msra.mxu0 0
    %639 = vmatprep.subr.bf16.mxu0 0
    %640 = vmatpush2.bf16.msra.mxu0 0
    %641 = vmatprep.mubr.bf16.mxu0 0
    %642 = vmatmul.mubr.bf16.gmra.mxu0 %v607
    %v643 = vpop.f32.mrf.mxu0
    %v644 = vadd.f32 0.0, %v643
    %v645 = vpop.f32.mrf.mxu0
    %v646 = vpop.f32.mrf.mxu0
    %v647 = vadd.f32 0.0, %v646
    %v648 = vpop.f32.mrf.mxu0
    %649 = vdwg.mxu0
    %s650 = smul.addr %s183, 4
    %s651 = scalar_lea.vmem [#allocation5], %s650
    %v652 = vld [vmem:[%s651] sm:$0xf]
    %v653 = vld [vmem:[%s651 + $0x4] sm:$0xf]
    %v654 = vld [vmem:[#allocation5] sm:$0xf]
    %v655 = vld [vmem:[#allocation5 + $0x4] sm:$0xf]
    %v656 = vld [vmem:[#allocation11] sm:$0xf]
    %v657 = vld [vmem:[#allocation11 + $0x4] sm:$0xf]
    %v658 = vld [vmem:[#allocation11 + $0x8] sm:$0xf]
    %v659 = vld [vmem:[#allocation11 + $0xc] sm:$0xf]
    %v660 = vld [vmem:[#allocation11 + $0x10] sm:$0xf]
    %v661 = vld [vmem:[#allocation11 + $0x14] sm:$0xf]
    %v662 = vld [vmem:[#allocation11 + $0x18] sm:$0xf]
    %v663 = vld [vmem:[#allocation11 + $0x1c] sm:$0xf]
    %v664 = vld [vmem:[#allocation11 + $0x20] sm:$0xf]
    %v665 = vld [vmem:[#allocation11 + $0x24] sm:$0xf]
    %v666 = vld [vmem:[#allocation11 + $0x28] sm:$0xf]
    %v667 = vld [vmem:[#allocation11 + $0x2c] sm:$0xf]
    %v668 = vld [vmem:[#allocation11 + $0x30] sm:$0xf]
    %v669 = vld [vmem:[#allocation11 + $0x34] sm:$0xf]
    %v670 = vld [vmem:[#allocation11 + $0x38] sm:$0xf]
    %v671 = vld [vmem:[#allocation11 + $0x3c] sm:$0xf]
    %v672 = vld [vmem:[%s11] sm:$0x1]
    %v673 = vlaneseq
    %v674 = vshrl.u32 %v673, 7
    %v675 = vsub.s32 0, %v674
    %v676 = vrot.slane %v672, %v675
    %v679 = vunpack.c.l.b16 %v652
    %v680 = vunpack.c.l.b16 %v653
    %v681 = vpack.c.b16 %v680, %v679
    %v699 = vunpack.c.l.b16 %v656
    %v700 = vunpack.c.l.b16 %v657
    %v701 = vunpack.c.l.b16 %v658
    %v702 = vunpack.c.l.b16 %v659
    %v703 = vunpack.c.l.b16 %v660
    %v704 = vunpack.c.l.b16 %v661
    %v705 = vunpack.c.l.b16 %v662
    %v706 = vunpack.c.l.b16 %v663
    %v707 = vunpack.c.l.b16 %v664
    %v708 = vunpack.c.l.b16 %v665
    %v709 = vunpack.c.l.b16 %v666
    %v710 = vunpack.c.l.b16 %v667
    %v711 = vunpack.c.l.b16 %v668
    %v712 = vunpack.c.l.b16 %v669
    %v713 = vunpack.c.l.b16 %v670
    %v714 = vunpack.c.l.b16 %v671
    %v715 = vpack.c.b16 %v700, %v699
    %v716 = vpack.c.b16 %v702, %v701
    %v717 = vpack.c.b16 %v704, %v703
    %v718 = vpack.c.b16 %v706, %v705
    %v719 = vpack.c.b16 %v708, %v707
    %v720 = vpack.c.b16 %v710, %v709
    %v721 = vpack.c.b16 %v712, %v711
    %v722 = vpack.c.b16 %v714, %v713
    %731 = vmatprep.subr.bf16.mxu0 0
    %732 = vmatpush1.bf16.msra.mxu0 %v722
    %733 = vmatprep.subr.bf16.mxu0 0
    %734 = vmatpush1.bf16.msra.mxu0 %v721
    %735 = vmatprep.subr.bf16.mxu0 0
    %736 = vmatpush1.bf16.msra.mxu0 %v720
    %737 = vmatprep.subr.bf16.mxu0 0
    %738 = vmatpush1.bf16.msra.mxu0 %v719
    %739 = vmatprep.subr.bf16.mxu0 0
    %740 = vmatpush1.bf16.msra.mxu0 %v718
    %741 = vmatprep.subr.bf16.mxu0 0
    %742 = vmatpush1.bf16.msra.mxu0 %v717
    %743 = vmatprep.subr.bf16.mxu0 0
    %744 = vmatpush1.bf16.msra.mxu0 %v716
    %745 = vmatprep.subr.bf16.mxu0 0
    %746 = vmatpush1.bf16.msra.mxu0 %v715
    %747 = vmatprep.subr.bf16.mxu0 0
    %748 = vmatpush2.bf16.msra.mxu0 0
    %749 = vmatprep.subr.bf16.mxu0 0
    %750 = vmatpush2.bf16.msra.mxu0 0
    %751 = vmatprep.subr.bf16.mxu0 0
    %752 = vmatpush2.bf16.msra.mxu0 0
    %753 = vmatprep.subr.bf16.mxu0 0
    %754 = vmatpush2.bf16.msra.mxu0 0
    %755 = vmatprep.subr.bf16.mxu0 0
    %756 = vmatpush2.bf16.msra.mxu0 0
    %757 = vmatprep.subr.bf16.mxu0 0
    %758 = vmatpush2.bf16.msra.mxu0 0
    %759 = vmatprep.subr.bf16.mxu0 0
    %760 = vmatpush2.bf16.msra.mxu0 0
    %761 = vmatprep.subr.bf16.mxu0 0
    %762 = vmatpush2.bf16.msra.mxu0 0
    %763 = vmatprep.mubr.bf16.mxu0 0
    %764 = vmatmul.mubr.bf16.gmra.mxu0 %v681
    %v765 = vpop.f32.mrf.mxu0
    %v766 = vadd.f32 %v676, %v765
    %v767 = vpop.f32.mrf.mxu0
    %v768 = vpop.f32.mrf.mxu0
    %v769 = vadd.f32 %v676, %v768
    %v770 = vpop.f32.mrf.mxu0
    %771 = vdwg.mxu0
    %v772 = vpack.c.bf16 %v769, %v766
    %v773 = vld [vmem:[#allocation13] sm:$0xf]
    %v774 = vld [vmem:[#allocation13 + $0x4] sm:$0xf]
    %v775 = vld [vmem:[#allocation13 + $0x8] sm:$0xf]
    %v776 = vld [vmem:[#allocation13 + $0xc] sm:$0xf]
    %v777 = vld [vmem:[#allocation13 + $0x10] sm:$0xf]
    %v778 = vld [vmem:[#allocation13 + $0x14] sm:$0xf]
    %v779 = vld [vmem:[#allocation13 + $0x18] sm:$0xf]
    %v780 = vld [vmem:[#allocation13 + $0x1c] sm:$0xf]
    %v781 = vld [vmem:[#allocation13 + $0x20] sm:$0xf]
    %v782 = vld [vmem:[#allocation13 + $0x24] sm:$0xf]
    %v783 = vld [vmem:[#allocation13 + $0x28] sm:$0xf]
    %v784 = vld [vmem:[#allocation13 + $0x2c] sm:$0xf]
    %v785 = vld [vmem:[#allocation13 + $0x30] sm:$0xf]
    %v786 = vld [vmem:[#allocation13 + $0x34] sm:$0xf]
    %v787 = vld [vmem:[#allocation13 + $0x38] sm:$0xf]
    %v788 = vld [vmem:[#allocation13 + $0x3c] sm:$0xf]
    %v789 = vld [vmem:[%s11 + $0x1] sm:$0x1]
    %v790 = vlaneseq
    %v791 = vshrl.u32 %v790, 7
    %v792 = vsub.s32 0, %v791
    %v793 = vrot.slane %v789, %v792
    %v796 = vunpack.c.l.b16 %v654
    %v797 = vunpack.c.l.b16 %v655
    %v798 = vpack.c.b16 %v797, %v796
    %v816 = vunpack.c.l.b16 %v773
    %v817 = vunpack.c.l.b16 %v774
    %v818 = vunpack.c.l.b16 %v775
    %v819 = vunpack.c.l.b16 %v776
    %v820 = vunpack.c.l.b16 %v777
    %v821 = vunpack.c.l.b16 %v778
    %v822 = vunpack.c.l.b16 %v779
    %v823 = vunpack.c.l.b16 %v780
    %v824 = vunpack.c.l.b16 %v781
    %v825 = vunpack.c.l.b16 %v782
    %v826 = vunpack.c.l.b16 %v783
    %v827 = vunpack.c.l.b16 %v784
    %v828 = vunpack.c.l.b16 %v785
    %v829 = vunpack.c.l.b16 %v786
    %v830 = vunpack.c.l.b16 %v787
    %v831 = vunpack.c.l.b16 %v788
    %v832 = vpack.c.b16 %v817, %v816
    %v833 = vpack.c.b16 %v819, %v818
    %v834 = vpack.c.b16 %v821, %v820
    %v835 = vpack.c.b16 %v823, %v822
    %v836 = vpack.c.b16 %v825, %v824
    %v837 = vpack.c.b16 %v827, %v826
    %v838 = vpack.c.b16 %v829, %v828
    %v839 = vpack.c.b16 %v831, %v830
    %848 = vmatprep.subr.bf16.mxu0 0
    %849 = vmatpush1.bf16.msra.mxu0 %v839
    %850 = vmatprep.subr.bf16.mxu0 0
    %851 = vmatpush1.bf16.msra.mxu0 %v838
    %852 = vmatprep.subr.bf16.mxu0 0
    %853 = vmatpush1.bf16.msra.mxu0 %v837
    %854 = vmatprep.subr.bf16.mxu0 0
    %855 = vmatpush1.bf16.msra.mxu0 %v836
    %856 = vmatprep.subr.bf16.mxu0 0
    %857 = vmatpush1.bf16.msra.mxu0 %v835
    %858 = vmatprep.subr.bf16.mxu0 0
    %859 = vmatpush1.bf16.msra.mxu0 %v834
    %860 = vmatprep.subr.bf16.mxu0 0
    %861 = vmatpush1.bf16.msra.mxu0 %v833
    %862 = vmatprep.subr.bf16.mxu0 0
    %863 = vmatpush1.bf16.msra.mxu0 %v832
    %864 = vmatprep.subr.bf16.mxu0 0
    %865 = vmatpush2.bf16.msra.mxu0 0
    %866 = vmatprep.subr.bf16.mxu0 0
    %867 = vmatpush2.bf16.msra.mxu0 0
    %868 = vmatprep.subr.bf16.mxu0 0
    %869 = vmatpush2.bf16.msra.mxu0 0
    %870 = vmatprep.subr.bf16.mxu0 0
    %871 = vmatpush2.bf16.msra.mxu0 0
    %872 = vmatprep.subr.bf16.mxu0 0
    %873 = vmatpush2.bf16.msra.mxu0 0
    %874 = vmatprep.subr.bf16.mxu0 0
    %875 = vmatpush2.bf16.msra.mxu0 0
    %876 = vmatprep.subr.bf16.mxu0 0
    %877 = vmatpush2.bf16.msra.mxu0 0
    %878 = vmatprep.subr.bf16.mxu0 0
    %879 = vmatpush2.bf16.msra.mxu0 0
    %880 = vmatprep.mubr.bf16.mxu0 0
    %881 = vmatmul.mubr.bf16.gmra.mxu0 %v798
    %v882 = vpop.f32.mrf.mxu0
    %v883 = vadd.f32 %v793, %v882
    %v884 = vpop.f32.mrf.mxu0
    %v885 = vpop.f32.mrf.mxu0
    %v886 = vadd.f32 %v793, %v885
    %v887 = vpop.f32.mrf.mxu0
    %888 = vdwg.mxu0
    %v889 = vpack.c.bf16 %v886, %v883
    %v890 = vld [vmem:[#allocation14] sm:$0xf]
    %v891 = vld [vmem:[#allocation14 + $0x4] sm:$0xf]
    %v892 = vld [vmem:[#allocation14 + $0x8] sm:$0xf]
    %v893 = vld [vmem:[#allocation14 + $0xc] sm:$0xf]
    %v894 = vld [vmem:[#allocation14 + $0x10] sm:$0xf]
    %v895 = vld [vmem:[#allocation14 + $0x14] sm:$0xf]
    %v896 = vld [vmem:[#allocation14 + $0x18] sm:$0xf]
    %v897 = vld [vmem:[#allocation14 + $0x1c] sm:$0xf]
    %v898 = vld [vmem:[#allocation14 + $0x20] sm:$0xf]
    %v899 = vld [vmem:[#allocation14 + $0x24] sm:$0xf]
    %v900 = vld [vmem:[#allocation14 + $0x28] sm:$0xf]
    %v901 = vld [vmem:[#allocation14 + $0x2c] sm:$0xf]
    %v902 = vld [vmem:[#allocation14 + $0x30] sm:$0xf]
    %v903 = vld [vmem:[#allocation14 + $0x34] sm:$0xf]
    %v904 = vld [vmem:[#allocation14 + $0x38] sm:$0xf]
    %v905 = vld [vmem:[#allocation14 + $0x3c] sm:$0xf]
    %v906 = vld [vmem:[%s11 + $0x2] sm:$0x1]
    %v907 = vlaneseq
    %v908 = vshrl.u32 %v907, 7
    %v909 = vsub.s32 0, %v908
    %v910 = vrot.slane %v906, %v909
    %v927 = vunpack.c.l.b16 %v890
    %v928 = vunpack.c.l.b16 %v891
    %v929 = vunpack.c.l.b16 %v892
    %v930 = vunpack.c.l.b16 %v893
    %v931 = vunpack.c.l.b16 %v894
    %v932 = vunpack.c.l.b16 %v895
    %v933 = vunpack.c.l.b16 %v896
    %v934 = vunpack.c.l.b16 %v897
    %v935 = vunpack.c.l.b16 %v898
    %v936 = vunpack.c.l.b16 %v899
    %v937 = vunpack.c.l.b16 %v900
    %v938 = vunpack.c.l.b16 %v901
    %v939 = vunpack.c.l.b16 %v902
    %v940 = vunpack.c.l.b16 %v903
    %v941 = vunpack.c.l.b16 %v904
    %v942 = vunpack.c.l.b16 %v905
    %v943 = vpack.c.b16 %v928, %v927
    %v944 = vpack.c.b16 %v930, %v929
    %v945 = vpack.c.b16 %v932, %v931
    %v946 = vpack.c.b16 %v934, %v933
    %v947 = vpack.c.b16 %v936, %v935
    %v948 = vpack.c.b16 %v938, %v937
    %v949 = vpack.c.b16 %v940, %v939
    %v950 = vpack.c.b16 %v942, %v941
    %959 = vmatprep.subr.bf16.mxu0 0
    %960 = vmatpush1.bf16.msra.mxu0 %v950
    %961 = vmatprep.subr.bf16.mxu0 0
    %962 = vmatpush1.bf16.msra.mxu0 %v949
    %963 = vmatprep.subr.bf16.mxu0 0
    %964 = vmatpush1.bf16.msra.mxu0 %v948
    %965 = vmatprep.subr.bf16.mxu0 0
    %966 = vmatpush1.bf16.msra.mxu0 %v947
    %967 = vmatprep.subr.bf16.mxu0 0
    %968 = vmatpush1.bf16.msra.mxu0 %v946
    %969 = vmatprep.subr.bf16.mxu0 0
    %970 = vmatpush1.bf16.msra.mxu0 %v945
    %971 = vmatprep.subr.bf16.mxu0 0
    %972 = vmatpush1.bf16.msra.mxu0 %v944
    %973 = vmatprep.subr.bf16.mxu0 0
    %974 = vmatpush1.bf16.msra.mxu0 %v943
    %975 = vmatprep.subr.bf16.mxu0 0
    %976 = vmatpush2.bf16.msra.mxu0 0
    %977 = vmatprep.subr.bf16.mxu0 0
    %978 = vmatpush2.bf16.msra.mxu0 0
    %979 = vmatprep.subr.bf16.mxu0 0
    %980 = vmatpush2.bf16.msra.mxu0 0
    %981 = vmatprep.subr.bf16.mxu0 0
    %982 = vmatpush2.bf16.msra.mxu0 0
    %983 = vmatprep.subr.bf16.mxu0 0
    %984 = vmatpush2.bf16.msra.mxu0 0
    %985 = vmatprep.subr.bf16.mxu0 0
    %986 = vmatpush2.bf16.msra.mxu0 0
    %987 = vmatprep.subr.bf16.mxu0 0
    %988 = vmatpush2.bf16.msra.mxu0 0
    %989 = vmatprep.subr.bf16.mxu0 0
    %990 = vmatpush2.bf16.msra.mxu0 0
    %991 = vmatprep.mubr.bf16.mxu0 0
    %992 = vmatmul.mubr.bf16.gmra.mxu0 %v798
    %v993 = vpop.f32.mrf.mxu0
    %v994 = vadd.f32 %v910, %v993
    %v995 = vpop.f32.mrf.mxu0
    %v996 = vpop.f32.mrf.mxu0
    %v997 = vadd.f32 %v910, %v996
    %v998 = vpop.f32.mrf.mxu0
    %999 = vdwg.mxu0
    %v1000 = vpack.c.bf16 %v997, %v994
    %1001 = vmatprep.subr.bf16.mxu0 0
    %1002 = vmatpush1.bf16.xpose.msra.mxu0 0
    %1003 = vmatprep.subr.bf16.mxu0 0
    %1004 = vmatpush1.bf16.xpose.msra.mxu0 0
    %1005 = vmatprep.subr.bf16.mxu0 0
    %1006 = vmatpush1.bf16.xpose.msra.mxu0 0
    %1007 = vmatprep.subr.bf16.mxu0 0
    %1008 = vmatpush1.bf16.xpose.msra.mxu0 0
    %1009 = vmatprep.subr.bf16.mxu0 0
    %1010 = vmatpush1.bf16.xpose.msra.mxu0 0
    %1011 = vmatprep.subr.bf16.mxu0 0
    %1012 = vmatpush1.bf16.xpose.msra.mxu0 0
    %1013 = vmatprep.subr.bf16.mxu0 0
    %1014 = vmatpush1.bf16.xpose.msra.mxu0 0
    %1015 = vmatprep.subr.bf16.mxu0 0
    %1016 = vmatpush1.bf16.xpose.msra.mxu0 %v889
    %1017 = vmatprep.subr.bf16.mxu0 0
    %1018 = vmatpush2.bf16.xpose.msra.mxu0 0
    %1019 = vmatprep.subr.bf16.mxu0 0
    %1020 = vmatpush2.bf16.xpose.msra.mxu0 0
    %1021 = vmatprep.subr.bf16.mxu0 0
    %1022 = vmatpush2.bf16.xpose.msra.mxu0 0
    %1023 = vmatprep.subr.bf16.mxu0 0
    %1024 = vmatpush2.bf16.xpose.msra.mxu0 0
    %1025 = vmatprep.subr.bf16.mxu0 0
    %1026 = vmatpush2.bf16.xpose.msra.mxu0 0
    %1027 = vmatprep.subr.bf16.mxu0 0
    %1028 = vmatpush2.bf16.xpose.msra.mxu0 0
    %1029 = vmatprep.subr.bf16.mxu0 0
    %1030 = vmatpush2.bf16.xpose.msra.mxu0 0
    %1031 = vmatprep.subr.bf16.mxu0 0
    %1032 = vmatpush2.bf16.xpose.msra.mxu0 0
    %1033 = vmatprep.mubr.bf16.mxu0 0
    %1034 = vmatmul.mubr.bf16.gmra.mxu0 %v772
    %v1035 = vpop.f32.mrf.mxu0
    %v1036 = vadd.f32 0.0, %v1035
    %v1037 = vpop.f32.mrf.mxu0
    %v1038 = vpop.f32.mrf.mxu0
    %v1039 = vadd.f32 0.0, %v1038
    %v1040 = vpop.f32.mrf.mxu0
    %1041 = vdwg.mxu0
    %v1042 = vsel %vm579, %v1036, -1e+30
    %v1043 = vsel %vm579, %v1039, -1e+30
    %v1044 = vsel %vm582, %v1042, -inf
    %1045 = vmax.xlane.f32.xlu0 %v1044
    %v1046 = vpop.xlane.xlu0 %1045
    %v1047 = vsel %vm582, %v1043, -inf
    %1048 = vmax.xlane.f32.xlu0 %v1047
    %v1049 = vpop.xlane.xlu0 %1048
    %v1050 = vsub.f32 %v1042, %v1046
    %v1051 = vsub.f32 %v1043, %v1049
    %v1052 = vmul.f32 %v1050, 1.442695
    %v1053 = vpow.pop %v1052
    %v1054 = vmul.f32 %v1051, 1.442695
    %v1055 = vpow.pop %v1054
    %v1056 = vsel %vm582, %v1053, 0.0
    %1057 = vadd.xlane.f32.xlu0 %v1056
    %v1058 = vpop.xlane.xlu0 %1057
    %v1059 = vsel %vm582, %v1055, 0.0
    %1060 = vadd.xlane.f32.xlu0 %v1059
    %v1061 = vpop.xlane.xlu0 %1060
    %v1062 = vrcp.pop %v1058
    %v1063 = vrcp.pop %v1061
    %v1064 = vmul.f32 %v1053, %v1062
    %v1065 = vmul.f32 %v1055, %v1063
    %v1066 = vpack.c.bf16 %v1065, %v1064
    %v1068 = vsel %vm582, %v1066, 0
    %1070 = vmatprep.subr.bf16.mxu0 0
    %1071 = vmatpush1.bf16.msra.mxu0 0
    %1072 = vmatprep.subr.bf16.mxu0 0
    %1073 = vmatpush1.bf16.msra.mxu0 0
    %1074 = vmatprep.subr.bf16.mxu0 0
    %1075 = vmatpush1.bf16.msra.mxu0 0
    %1076 = vmatprep.subr.bf16.mxu0 0
    %1077 = vmatpush1.bf16.msra.mxu0 0
    %1078 = vmatprep.subr.bf16.mxu0 0
    %1079 = vmatpush1.bf16.msra.mxu0 0
    %1080 = vmatprep.subr.bf16.mxu0 0
    %1081 = vmatpush1.bf16.msra.mxu0 0
    %1082 = vmatprep.subr.bf16.mxu0 0
    %1083 = vmatpush1.bf16.msra.mxu0 0
    %1084 = vmatprep.subr.bf16.mxu0 0
    %1085 = vmatpush1.bf16.msra.mxu0 %v1000
    %1086 = vmatprep.subr.bf16.mxu0 0
    %1087 = vmatpush2.bf16.msra.mxu0 0
    %1088 = vmatprep.subr.bf16.mxu0 0
    %1089 = vmatpush2.bf16.msra.mxu0 0
    %1090 = vmatprep.subr.bf16.mxu0 0
    %1091 = vmatpush2.bf16.msra.mxu0 0
    %1092 = vmatprep.subr.bf16.mxu0 0
    %1093 = vmatpush2.bf16.msra.mxu0 0
    %1094 = vmatprep.subr.bf16.mxu0 0
    %1095 = vmatpush2.bf16.msra.mxu0 0
    %1096 = vmatprep.subr.bf16.mxu0 0
    %1097 = vmatpush2.bf16.msra.mxu0 0
    %1098 = vmatprep.subr.bf16.mxu0 0
    %1099 = vmatpush2.bf16.msra.mxu0 0
    %1100 = vmatprep.subr.bf16.mxu0 0
    %1101 = vmatpush2.bf16.msra.mxu0 0
    %1102 = vmatprep.mubr.bf16.mxu0 0
    %1103 = vmatmul.mubr.bf16.gmra.mxu0 %v1068
    %v1104 = vpop.f32.mrf.mxu0
    %v1105 = vadd.f32 0.0, %v1104
    %v1106 = vpop.f32.mrf.mxu0
    %v1107 = vpop.f32.mrf.mxu0
    %v1108 = vadd.f32 0.0, %v1107
    %v1109 = vpop.f32.mrf.mxu0
    %1110 = vdwg.mxu0
    %v1111 = vpack.c.bf16 %v647, %v644
    %v1112 = vld [vmem:[#allocation16] sm:$0xf]
    %v1113 = vld [vmem:[#allocation16 + $0x4] sm:$0xf]
    %v1114 = vld [vmem:[#allocation16 + $0x8] sm:$0xf]
    %v1115 = vld [vmem:[#allocation16 + $0xc] sm:$0xf]
    %v1116 = vld [vmem:[#allocation16 + $0x10] sm:$0xf]
    %v1117 = vld [vmem:[#allocation16 + $0x14] sm:$0xf]
    %v1118 = vld [vmem:[#allocation16 + $0x18] sm:$0xf]
    %v1119 = vld [vmem:[#allocation16 + $0x1c] sm:$0xf]
    %v1120 = vld [vmem:[#allocation16 + $0x20] sm:$0xf]
    %v1121 = vld [vmem:[#allocation16 + $0x24] sm:$0xf]
    %v1122 = vld [vmem:[#allocation16 + $0x28] sm:$0xf]
    %v1123 = vld [vmem:[#allocation16 + $0x2c] sm:$0xf]
    %v1124 = vld [vmem:[#allocation16 + $0x30] sm:$0xf]
    %v1125 = vld [vmem:[#allocation16 + $0x34] sm:$0xf]
    %v1126 = vld [vmem:[#allocation16 + $0x38] sm:$0xf]
    %v1127 = vld [vmem:[#allocation16 + $0x3c] sm:$0xf]
    %v1128 = vpack.c.bf16 %v1108, %v1105
    %v1129 = vld [vmem:[#allocation17] sm:$0xf]
    %v1130 = vld [vmem:[#allocation17 + $0x4] sm:$0xf]
    %v1131 = vld [vmem:[#allocation17 + $0x8] sm:$0xf]
    %v1132 = vld [vmem:[#allocation17 + $0xc] sm:$0xf]
    %v1133 = vld [vmem:[#allocation17 + $0x10] sm:$0xf]
    %v1134 = vld [vmem:[#allocation17 + $0x14] sm:$0xf]
    %v1135 = vld [vmem:[#allocation17 + $0x18] sm:$0xf]
    %v1136 = vld [vmem:[#allocation17 + $0x1c] sm:$0xf]
    %v1137 = vld [vmem:[#allocation17 + $0x20] sm:$0xf]
    %v1138 = vld [vmem:[#allocation17 + $0x24] sm:$0xf]
    %v1139 = vld [vmem:[#allocation17 + $0x28] sm:$0xf]
    %v1140 = vld [vmem:[#allocation17 + $0x2c] sm:$0xf]
    %v1141 = vld [vmem:[#allocation17 + $0x30] sm:$0xf]
    %v1142 = vld [vmem:[#allocation17 + $0x34] sm:$0xf]
    %v1143 = vld [vmem:[#allocation17 + $0x38] sm:$0xf]
    %v1144 = vld [vmem:[#allocation17 + $0x3c] sm:$0xf]
    %v1161 = vunpack.c.l.b16 %v1129
    %v1162 = vunpack.c.l.b16 %v1130
    %v1163 = vunpack.c.l.b16 %v1131
    %v1164 = vunpack.c.l.b16 %v1132
    %v1165 = vunpack.c.l.b16 %v1133
    %v1166 = vunpack.c.l.b16 %v1134
    %v1167 = vunpack.c.l.b16 %v1135
    %v1168 = vunpack.c.l.b16 %v1136
    %v1169 = vunpack.c.l.b16 %v1137
    %v1170 = vunpack.c.l.b16 %v1138
    %v1171 = vunpack.c.l.b16 %v1139
    %v1172 = vunpack.c.l.b16 %v1140
    %v1173 = vunpack.c.l.b16 %v1141
    %v1174 = vunpack.c.l.b16 %v1142
    %v1175 = vunpack.c.l.b16 %v1143
    %v1176 = vunpack.c.l.b16 %v1144
    %v1177 = vpack.c.b16 %v1162, %v1161
    %v1178 = vpack.c.b16 %v1164, %v1163
    %v1179 = vpack.c.b16 %v1166, %v1165
    %v1180 = vpack.c.b16 %v1168, %v1167
    %v1181 = vpack.c.b16 %v1170, %v1169
    %v1182 = vpack.c.b16 %v1172, %v1171
    %v1183 = vpack.c.b16 %v1174, %v1173
    %v1184 = vpack.c.b16 %v1176, %v1175
    %1193 = vmatprep.subr.bf16.mxu0 0
    %1194 = vmatpush1.bf16.msra.mxu0 %v1184
    %1195 = vmatprep.subr.bf16.mxu0 0
    %1196 = vmatpush1.bf16.msra.mxu0 %v1183
    %1197 = vmatprep.subr.bf16.mxu0 0
    %1198 = vmatpush1.bf16.msra.mxu0 %v1182
    %1199 = vmatprep.subr.bf16.mxu0 0
    %1200 = vmatpush1.bf16.msra.mxu0 %v1181
    %1201 = vmatprep.subr.bf16.mxu0 0
    %1202 = vmatpush1.bf16.msra.mxu0 %v1180
    %1203 = vmatprep.subr.bf16.mxu0 0
    %1204 = vmatpush1.bf16.msra.mxu0 %v1179
    %1205 = vmatprep.subr.bf16.mxu0 0
    %1206 = vmatpush1.bf16.msra.mxu0 %v1178
    %1207 = vmatprep.subr.bf16.mxu0 0
    %1208 = vmatpush1.bf16.msra.mxu0 %v1177
    %1209 = vmatprep.subr.bf16.mxu0 0
    %1210 = vmatpush2.bf16.msra.mxu0 0
    %1211 = vmatprep.subr.bf16.mxu0 0
    %1212 = vmatpush2.bf16.msra.mxu0 0
    %1213 = vmatprep.subr.bf16.mxu0 0
    %1214 = vmatpush2.bf16.msra.mxu0 0
    %1215 = vmatprep.subr.bf16.mxu0 0
    %1216 = vmatpush2.bf16.msra.mxu0 0
    %1217 = vmatprep.subr.bf16.mxu0 0
    %1218 = vmatpush2.bf16.msra.mxu0 0
    %1219 = vmatprep.subr.bf16.mxu0 0
    %1220 = vmatpush2.bf16.msra.mxu0 0
    %1221 = vmatprep.subr.bf16.mxu0 0
    %1222 = vmatpush2.bf16.msra.mxu0 0
    %1223 = vmatprep.subr.bf16.mxu0 0
    %1224 = vmatpush2.bf16.msra.mxu0 0
    %1225 = vmatprep.mubr.bf16.mxu0 0
    %1226 = vmatmul.mubr.bf16.gmra.mxu0 %v1128
    %v1227 = vpop.f32.mrf.mxu0
    %v1228 = vadd.f32 0.0, %v1227
    %v1229 = vpop.f32.mrf.mxu0
    %v1230 = vpop.f32.mrf.mxu0
    %v1231 = vadd.f32 0.0, %v1230
    %v1232 = vpop.f32.mrf.mxu0
    %1233 = vdwg.mxu0
    %v1250 = vunpack.c.l.b16 %v1112
    %v1251 = vunpack.c.l.b16 %v1113
    %v1252 = vunpack.c.l.b16 %v1114
    %v1253 = vunpack.c.l.b16 %v1115
    %v1254 = vunpack.c.l.b16 %v1116
    %v1255 = vunpack.c.l.b16 %v1117
    %v1256 = vunpack.c.l.b16 %v1118
    %v1257 = vunpack.c.l.b16 %v1119
    %v1258 = vunpack.c.l.b16 %v1120
    %v1259 = vunpack.c.l.b16 %v1121
    %v1260 = vunpack.c.l.b16 %v1122
    %v1261 = vunpack.c.l.b16 %v1123
    %v1262 = vunpack.c.l.b16 %v1124
    %v1263 = vunpack.c.l.b16 %v1125
    %v1264 = vunpack.c.l.b16 %v1126
    %v1265 = vunpack.c.l.b16 %v1127
    %v1266 = vpack.c.b16 %v1251, %v1250
    %v1267 = vpack.c.b16 %v1253, %v1252
    %v1268 = vpack.c.b16 %v1255, %v1254
    %v1269 = vpack.c.b16 %v1257, %v1256
    %v1270 = vpack.c.b16 %v1259, %v1258
    %v1271 = vpack.c.b16 %v1261, %v1260
    %v1272 = vpack.c.b16 %v1263, %v1262
    %v1273 = vpack.c.b16 %v1265, %v1264
    %1282 = vmatprep.subr.bf16.mxu0 0
    %1283 = vmatpush1.bf16.msra.mxu0 %v1273
    %1284 = vmatprep.subr.bf16.mxu0 0
    %1285 = vmatpush1.bf16.msra.mxu0 %v1272
    %1286 = vmatprep.subr.bf16.mxu0 0
    %1287 = vmatpush1.bf16.msra.mxu0 %v1271
    %1288 = vmatprep.subr.bf16.mxu0 0
    %1289 = vmatpush1.bf16.msra.mxu0 %v1270
    %1290 = vmatprep.subr.bf16.mxu0 0
    %1291 = vmatpush1.bf16.msra.mxu0 %v1269
    %1292 = vmatprep.subr.bf16.mxu0 0
    %1293 = vmatpush1.bf16.msra.mxu0 %v1268
    %1294 = vmatprep.subr.bf16.mxu0 0
    %1295 = vmatpush1.bf16.msra.mxu0 %v1267
    %1296 = vmatprep.subr.bf16.mxu0 0
    %1297 = vmatpush1.bf16.msra.mxu0 %v1266
    %1298 = vmatprep.subr.bf16.mxu0 0
    %1299 = vmatpush2.bf16.msra.mxu0 0
    %1300 = vmatprep.subr.bf16.mxu0 0
    %1301 = vmatpush2.bf16.msra.mxu0 0
    %1302 = vmatprep.subr.bf16.mxu0 0
    %1303 = vmatpush2.bf16.msra.mxu0 0
    %1304 = vmatprep.subr.bf16.mxu0 0
    %1305 = vmatpush2.bf16.msra.mxu0 0
    %1306 = vmatprep.subr.bf16.mxu0 0
    %1307 = vmatpush2.bf16.msra.mxu0 0
    %1308 = vmatprep.subr.bf16.mxu0 0
    %1309 = vmatpush2.bf16.msra.mxu0 0
    %1310 = vmatprep.subr.bf16.mxu0 0
    %1311 = vmatpush2.bf16.msra.mxu0 0
    %1312 = vmatprep.subr.bf16.mxu0 0
    %1313 = vmatpush2.bf16.msra.mxu0 0
    %1314 = vmatprep.mubr.bf16.mxu0 0
    %1315 = vmatmul.mubr.bf16.gmra.mxu0 %v1111
    %v1316 = vpop.f32.mrf.mxu0
    %v1317 = vadd.f32 %v1228, %v1316
    %v1318 = vpop.f32.mrf.mxu0
    %v1319 = vpop.f32.mrf.mxu0
    %v1320 = vadd.f32 %v1231, %v1319
    %v1321 = vpop.f32.mrf.mxu0
    %1322 = vdwg.mxu0
    %v1323 = vld [vmem:[%s12] sm:$0x1]
    %v1325 = vlaneseq
    %v1326 = vshrl.u32 %v1325, 7
    %v1327 = vsub.s32 0, %v1326
    %v1328 = vrot.slane %v1323, %v1327
    %v1330 = vadd.f32 %v1317, %v1328
    %v1331 = vadd.f32 %v1320, %v1328
    %1332 = vst [vmem:[#allocation19] sm:$0xff] %v1330
    %1333 = vst [vmem:[#allocation19 + $0x8] sm:$0xff] %v1331
    // Predicated region
    $region94: #{tpu_custom_call.1} parent=1 // pred_check
      _
    $region95: #{tpu_custom_call.1} parent=1 // pred_check_branch
      %1335 = sbr.rel (0) target = $region97
    $region96: #{tpu_custom_call.1} parent=1 // pred_region
      %s1337 = ssub.s32 256, 256
      %1338 = vsyncadd [#allocation4], %s1337
      %s1339 = sshll.u32 [#allocation19], 4
      %s1340 = int_to_ptr.vmem [resolvable:$true] %s1339
      %1345 = dma.vmem_to_hbm [thread:$0]  %s1340, 256, %s13, [#allocation4], 128, 128, 8
    $region97: #{tpu_custom_call.1} parent=1 // pred_fallthru
      _
    // Predicated region
    $region98: #{tpu_custom_call.1} parent=1 // pred_check
      _
    $region99: #{tpu_custom_call.1} parent=1 // pred_check_branch
      %1347 = sbr.rel (0) target = $region101
    $region100: #{tpu_custom_call.1} parent=1 // pred_region
      %1348 = dma.done [#allocation4], 256
    $region101: #{tpu_custom_call.1} parent=1 // pred_fallthru
      _
    %1349 = vsyncpa [#allocation3], 1
    %1350 = vsyncpa [#allocation6], 1
    %1351 = vsyncpa [#allocation9], 1
    %1352 = vsyncpa [#allocation12], 1
    %1353 = vsyncpa [#allocation15], 1
    %1354 = vsyncpa [#allocation18], 1
    %1355 = vsyncpa [#allocation4], 1

</llo_original>
